<compile_context>
chip_gen: v7x
topology: tpu7x:2x2x1
jax: 0.10.0
libtpu: 0.0.40
codegen_flags: <defaults>
</compile_context>

<pallas_src>
import functools

import jax
import jax.numpy as jnp
from jax.experimental import pallas as pl
from jax.experimental.pallas import tpu as pltpu

LANE = 128           # vreg lane width: pad all feature dims to a multiple of this
DEFAULT_TILE_B = 256 # >= MXU row count on v6e/v7x (256) and v5e (128)


def _round_up(n: int, m: int) -> int:
    return (n + m - 1) // m * m


def mlp_kernel(x_ref,
               w1_ref, b1_ref,
               w2_ref, b2_ref,
               w3_ref, b3_ref,
               w4_ref, b4_ref,
               o_ref):
    """One batch tile: (Linear+ReLU)x3 + Linear, all in VMEM.

    Weights are bf16 (MXU-native); activations are cast to bf16 only at the
    jnp.dot inputs, while bias add / ReLU stay in f32 (VPU-friendly on v5e).
    """
    h = x_ref[...]  # (TILE_B, F_IN) f32

    h = jnp.dot(h.astype(jnp.bfloat16), w1_ref[...],
                preferred_element_type=jnp.float32) + b1_ref[...]
    h = jnp.maximum(h, 0.0)

    h = jnp.dot(h.astype(jnp.bfloat16), w2_ref[...],
                preferred_element_type=jnp.float32) + b2_ref[...]
    h = jnp.maximum(h, 0.0)

    h = jnp.dot(h.astype(jnp.bfloat16), w3_ref[...],
                preferred_element_type=jnp.float32) + b3_ref[...]
    h = jnp.maximum(h, 0.0)

    h = jnp.dot(h.astype(jnp.bfloat16), w4_ref[...],
                preferred_element_type=jnp.float32) + b4_ref[...]
    o_ref[...] = h.astype(o_ref.dtype)  # lane-dense (TILE_B, F_OUT) store


def init_params(key, n_inputs, n_classes):
    """Deterministic PyTorch-Linear-style init (uniform +-1/sqrt(fan_in)), f32."""
    dims = [(n_inputs, 128), (128, 512), (512, 128), (128, n_classes)]
    params = {}
    keys = jax.random.split(key, 2 * len(dims))
    for i, (fan_in, fan_out) in enumerate(dims):
        bound = 1.0 / jnp.sqrt(fan_in)
        params[f"w{i+1}"] = jax.random.uniform(
            keys[2 * i], (fan_in, fan_out),
            minval=-bound, maxval=bound, dtype=jnp.float32)
        params[f"b{i+1}"] = jax.random.uniform(
            keys[2 * i + 1], (1, fan_out),
            minval=-bound, maxval=bound, dtype=jnp.float32)
    return params


def prepare_params(params, n_inputs, n_classes):
    """Lane-pad the narrow feature dims to 128 and cast weights to bf16.

    Padding with zeros is exact: extra input columns contribute 0 to layer 1,
    extra output columns are 0*h3 + 0 and are sliced off in the wrapper.
    Biases stay f32 (elementwise path stays f32 in the kernel).
    """
    f_in = _round_up(max(n_inputs, LANE), LANE)
    f_out = _round_up(max(n_classes, LANE), LANE)

    w1 = jnp.zeros((f_in, 128), jnp.float32).at[:n_inputs, :].set(params["w1"])
    w4 = jnp.zeros((128, f_out), jnp.float32).at[:, :n_classes].set(params["w4"])
    b4 = jnp.zeros((1, f_out), jnp.float32).at[:, :n_classes].set(params["b4"])

    padded = {
        "w1": w1.astype(jnp.bfloat16),
        "b1": params["b1"],
        "w2": params["w2"].astype(jnp.bfloat16),
        "b2": params["b2"],
        "w3": params["w3"].astype(jnp.bfloat16),
        "b3": params["b3"],
        "w4": w4.astype(jnp.bfloat16),
        "b4": b4,
    }
    return padded


@functools.partial(jax.jit, static_argnames=("n_classes", "tile_b"))
def mlp_forward(x, padded_params, *, n_classes, tile_b=DEFAULT_TILE_B):
    """x: (B, n_inputs) f32. padded_params: output of prepare_params. -> (B, n_classes) f32."""
    B, n_in = x.shape
    f_in = padded_params["w1"].shape[0]
    f_out = padded_params["w4"].shape[1]

    # Pad batch up to a multiple of the batch tile; pad features to the lane width.
    b_pad = _round_up(max(B, tile_b), tile_b)
    x_p = jnp.zeros((b_pad, f_in), jnp.float32).at[:B, :n_in].set(x)

    grid = (b_pad // tile_b,)

    # Activations march over the batch grid; weights/biases stay resident.
    x_spec = pl.BlockSpec((tile_b, f_in), lambda i: (i, 0))
    out_spec = pl.BlockSpec((tile_b, f_out), lambda i: (i, 0))

    def resident(shape):
        return pl.BlockSpec(shape, lambda i: (0, 0))

    in_specs = [
        x_spec,
        resident((f_in, 128)), resident((1, 128)),
        resident((128, 512)), resident((1, 512)),
        resident((512, 128)), resident((1, 128)),
        resident((128, f_out)), resident((1, f_out)),
    ]

    flops = 2 * b_pad * (f_in * 128 + 128 * 512 + 512 * 128 + 128 * f_out)
    param_bytes = sum(int(v.size) * v.dtype.itemsize for v in padded_params.values())
    bytes_accessed = int(x_p.size) * 4 + param_bytes + b_pad * f_out * 4

    out_padded = pl.pallas_call(
        mlp_kernel,
        out_shape=jax.ShapeDtypeStruct((b_pad, f_out), jnp.float32),
        grid=grid,
        in_specs=in_specs,
        out_specs=out_spec,
        compiler_params=pltpu.CompilerParams(
            dimension_semantics=("parallel",),     # shard batch grid across v7x's 2 TCs
            vmem_limit_bytes=32 * 1024 * 1024,     # sized for v7x (64 MiB VMEM, 32 MiB scoped)
        ),
        cost_estimate=pl.CostEstimate(
            flops=flops, transcendentals=0, bytes_accessed=bytes_accessed),
    )(x_p,
      padded_params["w1"], padded_params["b1"],
      padded_params["w2"], padded_params["b2"],
      padded_params["w3"], padded_params["b3"],
      padded_params["w4"], padded_params["b4"])

    return out_padded[:B, :n_classes]


def mlp_reference(x, params):
    """Pure-JAX reference mirroring the kernel's bf16-into-MXU numerics."""
    def lin(h, w, b):
        return jnp.dot(h.astype(jnp.bfloat16), w.astype(jnp.bfloat16),
                       preferred_element_type=jnp.float32) + b
    h = jnp.maximum(lin(x, params["w1"], params["b1"]), 0.0)
    h = jnp.maximum(lin(h, params["w2"], params["b2"]), 0.0)
    h = jnp.maximum(lin(h, params["w3"], params["b3"]), 0.0)
    return lin(h, params["w4"], params["b4"])


if __name__ == "__main__":
    key = jax.random.PRNGKey(0)
    k_x, k_p = jax.random.split(key)

    batch = 8          # small test batch; wrapper pads to TILE_B and slices back
    n_inputs = 32      # e.g. flattened landmark coordinates
    n_classes = 16

    x = jax.random.normal(k_x, (batch, n_inputs), dtype=jnp.float32)
    params = init_params(k_p, n_inputs, n_classes)
    padded_params = prepare_params(params, n_inputs, n_classes)

    out = mlp_forward(x, padded_params, n_classes=n_classes, tile_b=DEFAULT_TILE_B)
    out = jax.block_until_ready(out)

    ref = mlp_reference(x, params)
    assert out.shape == (batch, n_classes)
    assert jnp.allclose(out, ref, atol=2e-3, rtol=2e-3), float(jnp.max(jnp.abs(out - ref)))

    print("KERNEL_OK")
</pallas_src>

<mosaic_0001>
module attributes {stable_mosaic.version = 11 : i64} {
  func.func @mlp_kernel(%arg0: i32, %arg1: memref<256x128xf32, #tpu.memory_space<vmem>>, %arg2: memref<128x128xbf16, #tpu.memory_space<vmem>>, %arg3: memref<1x128xf32, #tpu.memory_space<vmem>>, %arg4: memref<128x512xbf16, #tpu.memory_space<vmem>>, %arg5: memref<1x512xf32, #tpu.memory_space<vmem>>, %arg6: memref<512x128xbf16, #tpu.memory_space<vmem>>, %arg7: memref<1x128xf32, #tpu.memory_space<vmem>>, %arg8: memref<128x128xbf16, #tpu.memory_space<vmem>>, %arg9: memref<1x128xf32, #tpu.memory_space<vmem>>, %arg10: memref<256x128xf32, #tpu.memory_space<vmem>>) attributes {dimension_semantics = [#tpu.dimension_semantics<parallel>], iteration_bounds = array<i64: 1>, scalar_prefetch = 0 : i64, scratch_operands = 0 : i64, tpu.core_type = #tpu.core_type<tc>, window_params = [{transform_indices = @transform_0, window_bounds = array<i64: 256, 128>}, {pipeline_mode = #tpu.pipeline_mode<synchronous>, transform_indices = @transform_1, window_bounds = array<i64: 128, 128>}, {pipeline_mode = #tpu.pipeline_mode<synchronous>, transform_indices = @transform_2, window_bounds = array<i64: 1, 128>}, {pipeline_mode = #tpu.pipeline_mode<synchronous>, transform_indices = @transform_3, window_bounds = array<i64: 128, 512>}, {pipeline_mode = #tpu.pipeline_mode<synchronous>, transform_indices = @transform_4, window_bounds = array<i64: 1, 512>}, {pipeline_mode = #tpu.pipeline_mode<synchronous>, transform_indices = @transform_5, window_bounds = array<i64: 512, 128>}, {pipeline_mode = #tpu.pipeline_mode<synchronous>, transform_indices = @transform_6, window_bounds = array<i64: 1, 128>}, {pipeline_mode = #tpu.pipeline_mode<synchronous>, transform_indices = @transform_7, window_bounds = array<i64: 128, 128>}, {pipeline_mode = #tpu.pipeline_mode<synchronous>, transform_indices = @transform_8, window_bounds = array<i64: 1, 128>}, {transform_indices = @transform_9, window_bounds = array<i64: 256, 128>}]} {
    %c0 = arith.constant 0 : index
    %c0_0 = arith.constant 0 : index
    %0 = vector.load %arg1[%c0, %c0_0] : memref<256x128xf32, #tpu.memory_space<vmem>>, vector<256x128xf32>
    %1 = arith.truncf %0 : vector<256x128xf32> to vector<256x128xbf16>
    %c0_1 = arith.constant 0 : index
    %c0_2 = arith.constant 0 : index
    %2 = vector.load %arg2[%c0_1, %c0_2] : memref<128x128xbf16, #tpu.memory_space<vmem>>, vector<128x128xbf16>
    %cst = arith.constant dense<0.000000e+00> : vector<256x128xf32>
    %3 = tpu.matmul %1, %2, %cst {dimension_numbers = #tpu.dot_dimension_numbers<[1], [0], [0], [1], [0, 0, 1, 1], [], []>} : vector<256x128xbf16>, vector<128x128xbf16>, vector<256x128xf32> -> vector<256x128xf32>
    %c0_3 = arith.constant 0 : index
    %c0_4 = arith.constant 0 : index
    %4 = vector.load %arg3[%c0_3, %c0_4] : memref<1x128xf32, #tpu.memory_space<vmem>>, vector<1x128xf32>
    %5 = vector.broadcast %4 : vector<1x128xf32> to vector<256x128xf32>
    %6 = arith.addf %3, %5 : vector<256x128xf32>
    %cst_5 = arith.constant 0.000000e+00 : f32
    %7 = vector.broadcast %cst_5 : f32 to vector<256x128xf32>
    %8 = arith.maximumf %6, %7 : vector<256x128xf32>
    %9 = arith.truncf %8 : vector<256x128xf32> to vector<256x128xbf16>
    %c0_6 = arith.constant 0 : index
    %c0_7 = arith.constant 0 : index
    %10 = vector.load %arg4[%c0_6, %c0_7] : memref<128x512xbf16, #tpu.memory_space<vmem>>, vector<128x512xbf16>
    %cst_8 = arith.constant dense<0.000000e+00> : vector<256x512xf32>
    %11 = tpu.matmul %9, %10, %cst_8 {dimension_numbers = #tpu.dot_dimension_numbers<[1], [0], [0], [1], [0, 0, 1, 1], [], []>} : vector<256x128xbf16>, vector<128x512xbf16>, vector<256x512xf32> -> vector<256x512xf32>
    %c0_9 = arith.constant 0 : index
    %c0_10 = arith.constant 0 : index
    %12 = vector.load %arg5[%c0_9, %c0_10] : memref<1x512xf32, #tpu.memory_space<vmem>>, vector<1x512xf32>
    %13 = vector.broadcast %12 : vector<1x512xf32> to vector<256x512xf32>
    %14 = arith.addf %11, %13 : vector<256x512xf32>
    %cst_11 = arith.constant 0.000000e+00 : f32
    %15 = vector.broadcast %cst_11 : f32 to vector<256x512xf32>
    %16 = arith.maximumf %14, %15 : vector<256x512xf32>
    %17 = arith.truncf %16 : vector<256x512xf32> to vector<256x512xbf16>
    %c0_12 = arith.constant 0 : index
    %c0_13 = arith.constant 0 : index
    %18 = vector.load %arg6[%c0_12, %c0_13] : memref<512x128xbf16, #tpu.memory_space<vmem>>, vector<512x128xbf16>
    %cst_14 = arith.constant dense<0.000000e+00> : vector<256x128xf32>
    %19 = tpu.matmul %17, %18, %cst_14 {dimension_numbers = #tpu.dot_dimension_numbers<[1], [0], [0], [1], [0, 0, 1, 1], [], []>} : vector<256x512xbf16>, vector<512x128xbf16>, vector<256x128xf32> -> vector<256x128xf32>
    %c0_15 = arith.constant 0 : index
    %c0_16 = arith.constant 0 : index
    %20 = vector.load %arg7[%c0_15, %c0_16] : memref<1x128xf32, #tpu.memory_space<vmem>>, vector<1x128xf32>
    %21 = vector.broadcast %20 : vector<1x128xf32> to vector<256x128xf32>
    %22 = arith.addf %19, %21 : vector<256x128xf32>
    %cst_17 = arith.constant 0.000000e+00 : f32
    %23 = vector.broadcast %cst_17 : f32 to vector<256x128xf32>
    %24 = arith.maximumf %22, %23 : vector<256x128xf32>
    %25 = arith.truncf %24 : vector<256x128xf32> to vector<256x128xbf16>
    %c0_18 = arith.constant 0 : index
    %c0_19 = arith.constant 0 : index
    %26 = vector.load %arg8[%c0_18, %c0_19] : memref<128x128xbf16, #tpu.memory_space<vmem>>, vector<128x128xbf16>
    %cst_20 = arith.constant dense<0.000000e+00> : vector<256x128xf32>
    %27 = tpu.matmul %25, %26, %cst_20 {dimension_numbers = #tpu.dot_dimension_numbers<[1], [0], [0], [1], [0, 0, 1, 1], [], []>} : vector<256x128xbf16>, vector<128x128xbf16>, vector<256x128xf32> -> vector<256x128xf32>
    %c0_21 = arith.constant 0 : index
    %c0_22 = arith.constant 0 : index
    %28 = vector.load %arg9[%c0_21, %c0_22] : memref<1x128xf32, #tpu.memory_space<vmem>>, vector<1x128xf32>
    %29 = vector.broadcast %28 : vector<1x128xf32> to vector<256x128xf32>
    %30 = arith.addf %27, %29 : vector<256x128xf32>
    %c0_23 = arith.constant 0 : index
    %c0_24 = arith.constant 0 : index
    %31 = vector.load %arg10[%c0_23, %c0_24] : memref<256x128xf32, #tpu.memory_space<vmem>>, vector<256x128xf32>
    tpu.vector_store %arg10[%c0_23, %c0_24], %30 {strides = array<i32>} : memref<256x128xf32, #tpu.memory_space<vmem>>, vector<256x128xf32>,
    return
  }
  func.func @transform_0(%arg0: i32) -> (i32, i32) {
    %c0_i32 = arith.constant 0 : i32
    %c0_i32_0 = arith.constant 0 : i32
    return %arg0, %c0_i32 : i32, i32
  }
  func.func @transform_1(%arg0: i32) -> (i32, i32) {
    %c0_i32 = arith.constant 0 : i32
    %c0_i32_0 = arith.constant 0 : i32
    %c0_i32_1 = arith.constant 0 : i32
    return %c0_i32, %c0_i32_0 : i32, i32
  }
  func.func @transform_2(%arg0: i32) -> (i32, i32) {
    %c0_i32 = arith.constant 0 : i32
    %c0_i32_0 = arith.constant 0 : i32
    %c0_i32_1 = arith.constant 0 : i32
    return %c0_i32, %c0_i32_0 : i32, i32
  }
  func.func @transform_3(%arg0: i32) -> (i32, i32) {
    %c0_i32 = arith.constant 0 : i32
    %c0_i32_0 = arith.constant 0 : i32
    %c0_i32_1 = arith.constant 0 : i32
    return %c0_i32, %c0_i32_0 : i32, i32
  }
  func.func @transform_4(%arg0: i32) -> (i32, i32) {
    %c0_i32 = arith.constant 0 : i32
    %c0_i32_0 = arith.constant 0 : i32
    %c0_i32_1 = arith.constant 0 : i32
    return %c0_i32, %c0_i32_0 : i32, i32
  }
  func.func @transform_5(%arg0: i32) -> (i32, i32) {
    %c0_i32 = arith.constant 0 : i32
    %c0_i32_0 = arith.constant 0 : i32
    %c0_i32_1 = arith.constant 0 : i32
    return %c0_i32, %c0_i32_0 : i32, i32
  }
  func.func @transform_6(%arg0: i32) -> (i32, i32) {
    %c0_i32 = arith.constant 0 : i32
    %c0_i32_0 = arith.constant 0 : i32
    %c0_i32_1 = arith.constant 0 : i32
    return %c0_i32, %c0_i32_0 : i32, i32
  }
  func.func @transform_7(%arg0: i32) -> (i32, i32) {
    %c0_i32 = arith.constant 0 : i32
    %c0_i32_0 = arith.constant 0 : i32
    %c0_i32_1 = arith.constant 0 : i32
    return %c0_i32, %c0_i32_0 : i32, i32
  }
  func.func @transform_8(%arg0: i32) -> (i32, i32) {
    %c0_i32 = arith.constant 0 : i32
    %c0_i32_0 = arith.constant 0 : i32
    %c0_i32_1 = arith.constant 0 : i32
    return %c0_i32, %c0_i32_0 : i32, i32
  }
  func.func @transform_9(%arg0: i32) -> (i32, i32) {
    %c0_i32 = arith.constant 0 : i32
    %c0_i32_0 = arith.constant 0 : i32
    return %arg0, %c0_i32 : i32, i32
  }
}

</mosaic_0001>

<llo_original>
// kernel: mlp_forward.1
$region0: #{mlp_forward.1}
  #allocation0 [shape = 'u32[]', space=smem, size = 0x4, offset = 0x4, fixed_abs, tag = 'smem constant byte address 0x4 - core index']
  #allocation1 [shape = 'u32[144,128]{1,0:T(1,128)}', space=vmem, size = 0x12000, scoped, tag = 'internal scratch']
  %s0 = inlined_call_operand.vmem [shape: f32[256,128], index: 0, kind: input, shape index: {}]
  %s1 = inlined_call_operand.hbm [shape: bf16[128,128], index: 1, kind: input, shape index: {}]
  %s2 = inlined_call_operand.vmem [shape: f32[1,128], index: 2, kind: input, shape index: {}]
  %s3 = inlined_call_operand.vmem [shape: bf16[128,512], index: 3, kind: input, shape index: {}]
  %s4 = inlined_call_operand.vmem [shape: f32[1,512], index: 4, kind: input, shape index: {}]
  %s5 = inlined_call_operand.hbm [shape: bf16[512,128], index: 5, kind: input, shape index: {}]
  %s6 = inlined_call_operand.vmem [shape: f32[1,128], index: 6, kind: input, shape index: {}]
  %s7 = inlined_call_operand.hbm [shape: bf16[128,128], index: 7, kind: input, shape index: {}]
  %s8 = inlined_call_operand.vmem [shape: f32[1,128], index: 8, kind: input, shape index: {}]
  %s9 = inlined_call_operand.vmem [shape: f32[256,128], index: 9, kind: output, shape index: {}]
  %s10 = sld [smem:[#allocation0]]
  $region58: #{mlp_forward.1} parent=0
    _
  %s12 = ssub.s32 1, %s10
  %s13 = scalar_select 0, %s12, %s10
  $region1: #{mlp_forward.1} parent=0
    #allocation2 [shape = 'u8[32768]{0}', space=vmem, size = 0x8000, scoped, tag = 'input window, operand 1, single buffered']
    #allocation3 [shape = 's32[1]{0}', space=sflag, size = 0x4, scoped, tag = 'scoped memory for mlp_forward.1']
    #allocation4 [shape = 'u8[131072]{0}', space=vmem, size = 0x20000, scoped, tag = 'input window, operand 5, single buffered']
    #allocation5 [shape = 's32[1]{0}', space=sflag, size = 0x4, scoped, tag = 'scoped memory for mlp_forward.1']
    #allocation6 [shape = 'u8[32768]{0}', space=vmem, size = 0x8000, scoped, tag = 'input window, operand 7, single buffered']
    %14 = vsyncpa [#allocation3], 0
    %15 = vsyncpa [#allocation5], 0
    // Predicated region
    $region2: #{mlp_forward.1} parent=1 // pred_check
      _
    $region3: #{mlp_forward.1} parent=1 // pred_check_branch
      %17 = sbr.rel (0) target = $region5
    $region4: #{mlp_forward.1} parent=1 // pred_region
      _
    $region5: #{mlp_forward.1} parent=1 // pred_fallthru
      _
    // Predicated region
    $region6: #{mlp_forward.1} parent=1 // pred_check
      _
    $region7: #{mlp_forward.1} parent=1 // pred_check_branch
      %19 = sbr.rel (0) target = $region9
    $region8: #{mlp_forward.1} parent=1 // pred_region
      %s21 = ssub.s32 1024, 1024
      %22 = vsyncadd [#allocation3], %s21
      %s23 = sshll.u32 [#allocation2], 4
      %s24 = int_to_ptr.vmem [resolvable:$true] %s23
      %29 = dma.hbm_to_vmem [thread:$0]  %s1, 1024, %s24, [#allocation3], 64, 64, 4
    $region9: #{mlp_forward.1} parent=1 // pred_fallthru
      _
    // Predicated region
    $region10: #{mlp_forward.1} parent=1 // pred_check
      _
    $region11: #{mlp_forward.1} parent=1 // pred_check_branch
      %31 = sbr.rel (0) target = $region13
    $region12: #{mlp_forward.1} parent=1 // pred_region
      _
    $region13: #{mlp_forward.1} parent=1 // pred_fallthru
      _
    // Predicated region
    $region14: #{mlp_forward.1} parent=1 // pred_check
      _
    $region15: #{mlp_forward.1} parent=1 // pred_check_branch
      %33 = sbr.rel (0) target = $region17
    $region16: #{mlp_forward.1} parent=1 // pred_region
      _
    $region17: #{mlp_forward.1} parent=1 // pred_fallthru
      _
    // Predicated region
    $region18: #{mlp_forward.1} parent=1 // pred_check
      _
    $region19: #{mlp_forward.1} parent=1 // pred_check_branch
      %35 = sbr.rel (0) target = $region21
    $region20: #{mlp_forward.1} parent=1 // pred_region
      _
    $region21: #{mlp_forward.1} parent=1 // pred_fallthru
      _
    // Predicated region
    $region22: #{mlp_forward.1} parent=1 // pred_check
      _
    $region23: #{mlp_forward.1} parent=1 // pred_check_branch
      %37 = sbr.rel (0) target = $region25
    $region24: #{mlp_forward.1} parent=1 // pred_region
      %s39 = ssub.s32 4096, 4096
      %40 = vsyncadd [#allocation5], %s39
      %s41 = sshll.u32 [#allocation4], 4
      %s42 = int_to_ptr.vmem [resolvable:$true] %s41
      %47 = dma.hbm_to_vmem [thread:$0]  %s5, 4096, %s42, [#allocation5], 64, 64, 4
    $region25: #{mlp_forward.1} parent=1 // pred_fallthru
      _
    // Predicated region
    $region26: #{mlp_forward.1} parent=1 // pred_check
      _
    $region27: #{mlp_forward.1} parent=1 // pred_check_branch
      %49 = sbr.rel (0) target = $region29
    $region28: #{mlp_forward.1} parent=1 // pred_region
      _
    $region29: #{mlp_forward.1} parent=1 // pred_fallthru
      _
    // Predicated region
    $region30: #{mlp_forward.1} parent=1 // pred_check
      _
    $region31: #{mlp_forward.1} parent=1 // pred_check_branch
      %51 = sbr.rel (0) target = $region33
    $region32: #{mlp_forward.1} parent=1 // pred_region
      %s53 = ssub.s32 1024, 1024
      %54 = vsyncadd [#allocation5], %s53
      %s55 = sshll.u32 [#allocation6], 4
      %s56 = int_to_ptr.vmem [resolvable:$true] %s55
      %61 = dma.hbm_to_vmem [thread:$0]  %s7, 1024, %s56, [#allocation5], 64, 64, 4
    $region33: #{mlp_forward.1} parent=1 // pred_fallthru
      _
    // Predicated region
    $region34: #{mlp_forward.1} parent=1 // pred_check
      _
    $region35: #{mlp_forward.1} parent=1 // pred_check_branch
      %63 = sbr.rel (0) target = $region37
    $region36: #{mlp_forward.1} parent=1 // pred_region
      _
    $region37: #{mlp_forward.1} parent=1 // pred_fallthru
      _
    // Predicated region
    $region38: #{mlp_forward.1} parent=1 // pred_check
      _
    $region39: #{mlp_forward.1} parent=1 // pred_check_branch
      %65 = sbr.rel (0) target = $region41
    $region40: #{mlp_forward.1} parent=1 // pred_region
      %66 = dma.done [#allocation3], 1024
    $region41: #{mlp_forward.1} parent=1 // pred_fallthru
      _
    // Predicated region
    $region42: #{mlp_forward.1} parent=1 // pred_check
      _
    $region43: #{mlp_forward.1} parent=1 // pred_check_branch
      %68 = sbr.rel (0) target = $region45
    $region44: #{mlp_forward.1} parent=1 // pred_region
      %69 = dma.done [#allocation5], 4096
    $region45: #{mlp_forward.1} parent=1 // pred_fallthru
      _
    // Predicated region
    $region46: #{mlp_forward.1} parent=1 // pred_check
      _
    $region47: #{mlp_forward.1} parent=1 // pred_check_branch
      %71 = sbr.rel (0) target = $region49
    $region48: #{mlp_forward.1} parent=1 // pred_region
      %72 = dma.done [#allocation5], 1024
    $region49: #{mlp_forward.1} parent=1 // pred_fallthru
      _
    %v74 = vld [vmem:[%s0] sm:$0xff]
    %v75 = vld [vmem:[%s0 + $0x8] sm:$0xff]
    %v76 = vld [vmem:[%s0 + $0x10] sm:$0xff]
    %v77 = vld [vmem:[%s0 + $0x18] sm:$0xff]
    %v78 = vld [vmem:[%s0 + $0x20] sm:$0xff]
    %v79 = vld [vmem:[%s0 + $0x28] sm:$0xff]
    %v80 = vld [vmem:[%s0 + $0x30] sm:$0xff]
    %v81 = vld [vmem:[%s0 + $0x38] sm:$0xff]
    %v82 = vld [vmem:[%s0 + $0x40] sm:$0xff]
    %v83 = vld [vmem:[%s0 + $0x48] sm:$0xff]
    %v84 = vld [vmem:[%s0 + $0x50] sm:$0xff]
    %v85 = vld [vmem:[%s0 + $0x58] sm:$0xff]
    %v86 = vld [vmem:[%s0 + $0x60] sm:$0xff]
    %v87 = vld [vmem:[%s0 + $0x68] sm:$0xff]
    %v88 = vld [vmem:[%s0 + $0x70] sm:$0xff]
    %v89 = vld [vmem:[%s0 + $0x78] sm:$0xff]
    %v90 = vld [vmem:[%s0 + $0x80] sm:$0xff]
    %v91 = vld [vmem:[%s0 + $0x88] sm:$0xff]
    %v92 = vld [vmem:[%s0 + $0x90] sm:$0xff]
    %v93 = vld [vmem:[%s0 + $0x98] sm:$0xff]
    %v94 = vld [vmem:[%s0 + $0xa0] sm:$0xff]
    %v95 = vld [vmem:[%s0 + $0xa8] sm:$0xff]
    %v96 = vld [vmem:[%s0 + $0xb0] sm:$0xff]
    %v97 = vld [vmem:[%s0 + $0xb8] sm:$0xff]
    %v98 = vld [vmem:[%s0 + $0xc0] sm:$0xff]
    %v99 = vld [vmem:[%s0 + $0xc8] sm:$0xff]
    %v100 = vld [vmem:[%s0 + $0xd0] sm:$0xff]
    %v101 = vld [vmem:[%s0 + $0xd8] sm:$0xff]
    %v102 = vld [vmem:[%s0 + $0xe0] sm:$0xff]
    %v103 = vld [vmem:[%s0 + $0xe8] sm:$0xff]
    %v104 = vld [vmem:[%s0 + $0xf0] sm:$0xff]
    %v105 = vld [vmem:[%s0 + $0xf8] sm:$0xff]
    %v106 = vpack.c.bf16 %v75, %v74
    %v107 = vpack.c.bf16 %v77, %v76
    %v108 = vpack.c.bf16 %v79, %v78
    %v109 = vpack.c.bf16 %v81, %v80
    %v110 = vpack.c.bf16 %v83, %v82
    %v111 = vpack.c.bf16 %v85, %v84
    %v112 = vpack.c.bf16 %v87, %v86
    %v113 = vpack.c.bf16 %v89, %v88
    %v114 = vpack.c.bf16 %v91, %v90
    %v115 = vpack.c.bf16 %v93, %v92
    %v116 = vpack.c.bf16 %v95, %v94
    %v117 = vpack.c.bf16 %v97, %v96
    %v118 = vpack.c.bf16 %v99, %v98
    %v119 = vpack.c.bf16 %v101, %v100
    %v120 = vpack.c.bf16 %v103, %v102
    %v121 = vpack.c.bf16 %v105, %v104
    %v122 = vld [vmem:[#allocation2] sm:$0xf]
    %v123 = vld [vmem:[#allocation2 + $0x4] sm:$0xf]
    %v124 = vld [vmem:[#allocation2 + $0x8] sm:$0xf]
    %v125 = vld [vmem:[#allocation2 + $0xc] sm:$0xf]
    %v126 = vld [vmem:[#allocation2 + $0x10] sm:$0xf]
    %v127 = vld [vmem:[#allocation2 + $0x14] sm:$0xf]
    %v128 = vld [vmem:[#allocation2 + $0x18] sm:$0xf]
    %v129 = vld [vmem:[#allocation2 + $0x1c] sm:$0xf]
    %v130 = vld [vmem:[#allocation2 + $0x20] sm:$0xf]
    %v131 = vld [vmem:[#allocation2 + $0x24] sm:$0xf]
    %v132 = vld [vmem:[#allocation2 + $0x28] sm:$0xf]
    %v133 = vld [vmem:[#allocation2 + $0x2c] sm:$0xf]
    %v134 = vld [vmem:[#allocation2 + $0x30] sm:$0xf]
    %v135 = vld [vmem:[#allocation2 + $0x34] sm:$0xf]
    %v136 = vld [vmem:[#allocation2 + $0x38] sm:$0xf]
    %v137 = vld [vmem:[#allocation2 + $0x3c] sm:$0xf]
    %v138 = vld [vmem:[%s2] sm:$0x1]
    %v140 = vlaneseq
    %v141 = vshrl.u32 %v140, 7
    %v142 = vsub.s32 0, %v141
    %v143 = vrot.slane %v138, %v142
    %v161 = vunpack.c.l.b16 %v122
    %v162 = vunpack.c.l.b16 %v123
    %v163 = vunpack.c.l.b16 %v124
    %v164 = vunpack.c.l.b16 %v125
    %v165 = vunpack.c.l.b16 %v126
    %v166 = vunpack.c.l.b16 %v127
    %v167 = vunpack.c.l.b16 %v128
    %v168 = vunpack.c.l.b16 %v129
    %v169 = vunpack.c.l.b16 %v130
    %v170 = vunpack.c.l.b16 %v131
    %v171 = vunpack.c.l.b16 %v132
    %v172 = vunpack.c.l.b16 %v133
    %v173 = vunpack.c.l.b16 %v134
    %v174 = vunpack.c.l.b16 %v135
    %v175 = vunpack.c.l.b16 %v136
    %v176 = vunpack.c.l.b16 %v137
    %v177 = vpack.c.b16 %v162, %v161
    %v178 = vpack.c.b16 %v164, %v163
    %v179 = vpack.c.b16 %v166, %v165
    %v180 = vpack.c.b16 %v168, %v167
    %v181 = vpack.c.b16 %v170, %v169
    %v182 = vpack.c.b16 %v172, %v171
    %v183 = vpack.c.b16 %v174, %v173
    %v184 = vpack.c.b16 %v176, %v175
    %193 = vmatprep.subr.bf16.mxu0 0
    %194 = vmatpush1.bf16.msra.mxu0 %v177
    %195 = vmatprep.subr.bf16.mxu0 0
    %196 = vmatpush1.bf16.msra.mxu0 %v178
    %197 = vmatprep.subr.bf16.mxu0 0
    %198 = vmatpush1.bf16.msra.mxu0 %v179
    %199 = vmatprep.subr.bf16.mxu0 0
    %200 = vmatpush1.bf16.msra.mxu0 %v180
    %201 = vmatprep.subr.bf16.mxu0 0
    %202 = vmatpush1.bf16.msra.mxu0 %v181
    %203 = vmatprep.subr.bf16.mxu0 0
    %204 = vmatpush1.bf16.msra.mxu0 %v182
    %205 = vmatprep.subr.bf16.mxu0 0
    %206 = vmatpush1.bf16.msra.mxu0 %v183
    %207 = vmatprep.subr.bf16.mxu0 0
    %208 = vmatpush1.bf16.msra.mxu0 %v184
    %209 = vmatprep.subr.bf16.mxu0 0
    %210 = vmatpush1.bf16.msra.mxu0 0
    %211 = vmatprep.subr.bf16.mxu0 0
    %212 = vmatpush1.bf16.msra.mxu0 0
    %213 = vmatprep.subr.bf16.mxu0 0
    %214 = vmatpush1.bf16.msra.mxu0 0
    %215 = vmatprep.subr.bf16.mxu0 0
    %216 = vmatpush1.bf16.msra.mxu0 0
    %217 = vmatprep.subr.bf16.mxu0 0
    %218 = vmatpush1.bf16.msra.mxu0 0
    %219 = vmatprep.subr.bf16.mxu0 0
    %220 = vmatpush1.bf16.msra.mxu0 0
    %221 = vmatprep.subr.bf16.mxu0 0
    %222 = vmatpush1.bf16.msra.mxu0 0
    %223 = vmatprep.subr.bf16.mxu0 0
    %224 = vmatpush1.bf16.msra.mxu0 0
    %225 = vmatprep.mubr.bf16.mxu0 0
    %226 = vmatmul.mubr.bf16.gmra.mrb[0].mxu0 %v106
    %v227 = vpop.f32.mrb[0].mxu0
    %v228 = vadd.f32 %v143, %v227
    %v229 = vpop.f32.mrb[0].mxu0
    %v230 = vpop.f32.mrb[0].mxu0
    %v231 = vadd.f32 %v143, %v230
    %v232 = vpop.f32.mrb[0].mxu0
    %233 = vmatprep.mubr.bf16.mxu0 0
    %234 = vmatmul.mubr.bf16.gmra.mrb[0].mxu0 %v107
    %v235 = vpop.f32.mrb[0].mxu0
    %v236 = vadd.f32 %v143, %v235
    %v237 = vpop.f32.mrb[0].mxu0
    %v238 = vpop.f32.mrb[0].mxu0
    %v239 = vadd.f32 %v143, %v238
    %v240 = vpop.f32.mrb[0].mxu0
    %241 = vmatprep.mubr.bf16.mxu0 0
    %242 = vmatmul.mubr.bf16.gmra.mrb[0].mxu0 %v108
    %v243 = vpop.f32.mrb[0].mxu0
    %v244 = vadd.f32 %v143, %v243
    %v245 = vpop.f32.mrb[0].mxu0
    %v246 = vpop.f32.mrb[0].mxu0
    %v247 = vadd.f32 %v143, %v246
    %v248 = vpop.f32.mrb[0].mxu0
    %249 = vmatprep.mubr.bf16.mxu0 0
    %250 = vmatmul.mubr.bf16.gmra.mrb[0].mxu0 %v109
    %v251 = vpop.f32.mrb[0].mxu0
    %v252 = vadd.f32 %v143, %v251
    %v253 = vpop.f32.mrb[0].mxu0
    %v254 = vpop.f32.mrb[0].mxu0
    %v255 = vadd.f32 %v143, %v254
    %v256 = vpop.f32.mrb[0].mxu0
    %257 = vmatprep.mubr.bf16.mxu0 0
    %258 = vmatmul.mubr.bf16.gmra.mrb[0].mxu0 %v110
    %v259 = vpop.f32.mrb[0].mxu0
    %v260 = vadd.f32 %v143, %v259
    %v261 = vpop.f32.mrb[0].mxu0
    %v262 = vpop.f32.mrb[0].mxu0
    %v263 = vadd.f32 %v143, %v262
    %v264 = vpop.f32.mrb[0].mxu0
    %265 = vmatprep.mubr.bf16.mxu0 0
    %266 = vmatmul.mubr.bf16.gmra.mrb[0].mxu0 %v111
    %v267 = vpop.f32.mrb[0].mxu0
    %v268 = vadd.f32 %v143, %v267
    %v269 = vpop.f32.mrb[0].mxu0
    %v270 = vpop.f32.mrb[0].mxu0
    %v271 = vadd.f32 %v143, %v270
    %v272 = vpop.f32.mrb[0].mxu0
    %273 = vmatprep.mubr.bf16.mxu0 0
    %274 = vmatmul.mubr.bf16.gmra.mrb[0].mxu0 %v112
    %v275 = vpop.f32.mrb[0].mxu0
    %v276 = vadd.f32 %v143, %v275
    %v277 = vpop.f32.mrb[0].mxu0
    %v278 = vpop.f32.mrb[0].mxu0
    %v279 = vadd.f32 %v143, %v278
    %v280 = vpop.f32.mrb[0].mxu0
    %281 = vmatprep.mubr.bf16.mxu0 0
    %282 = vmatmul.mubr.bf16.gmra.mrb[0].mxu0 %v113
    %v283 = vpop.f32.mrb[0].mxu0
    %v284 = vadd.f32 %v143, %v283
    %v285 = vpop.f32.mrb[0].mxu0
    %v286 = vpop.f32.mrb[0].mxu0
    %v287 = vadd.f32 %v143, %v286
    %v288 = vpop.f32.mrb[0].mxu0
    %289 = vmatprep.mubr.bf16.mxu0 0
    %290 = vmatmul.mubr.bf16.gmra.mrb[0].mxu0 %v114
    %v291 = vpop.f32.mrb[0].mxu0
    %v292 = vadd.f32 %v143, %v291
    %v293 = vpop.f32.mrb[0].mxu0
    %v294 = vpop.f32.mrb[0].mxu0
    %v295 = vadd.f32 %v143, %v294
    %v296 = vpop.f32.mrb[0].mxu0
    %297 = vmatprep.mubr.bf16.mxu0 0
    %298 = vmatmul.mubr.bf16.gmra.mrb[0].mxu0 %v115
    %v299 = vpop.f32.mrb[0].mxu0
    %v300 = vadd.f32 %v143, %v299
    %v301 = vpop.f32.mrb[0].mxu0
    %v302 = vpop.f32.mrb[0].mxu0
    %v303 = vadd.f32 %v143, %v302
    %v304 = vpop.f32.mrb[0].mxu0
    %305 = vmatprep.mubr.bf16.mxu0 0
    %306 = vmatmul.mubr.bf16.gmra.mrb[0].mxu0 %v116
    %v307 = vpop.f32.mrb[0].mxu0
    %v308 = vadd.f32 %v143, %v307
    %v309 = vpop.f32.mrb[0].mxu0
    %v310 = vpop.f32.mrb[0].mxu0
    %v311 = vadd.f32 %v143, %v310
    %v312 = vpop.f32.mrb[0].mxu0
    %313 = vmatprep.mubr.bf16.mxu0 0
    %314 = vmatmul.mubr.bf16.gmra.mrb[0].mxu0 %v117
    %v315 = vpop.f32.mrb[0].mxu0
    %v316 = vadd.f32 %v143, %v315
    %v317 = vpop.f32.mrb[0].mxu0
    %v318 = vpop.f32.mrb[0].mxu0
    %v319 = vadd.f32 %v143, %v318
    %v320 = vpop.f32.mrb[0].mxu0
    %321 = vmatprep.mubr.bf16.mxu0 0
    %322 = vmatmul.mubr.bf16.gmra.mrb[0].mxu0 %v118
    %v323 = vpop.f32.mrb[0].mxu0
    %v324 = vadd.f32 %v143, %v323
    %v325 = vpop.f32.mrb[0].mxu0
    %v326 = vpop.f32.mrb[0].mxu0
    %v327 = vadd.f32 %v143, %v326
    %v328 = vpop.f32.mrb[0].mxu0
    %329 = vmatprep.mubr.bf16.mxu0 0
    %330 = vmatmul.mubr.bf16.gmra.mrb[0].mxu0 %v119
    %v331 = vpop.f32.mrb[0].mxu0
    %v332 = vadd.f32 %v143, %v331
    %v333 = vpop.f32.mrb[0].mxu0
    %v334 = vpop.f32.mrb[0].mxu0
    %v335 = vadd.f32 %v143, %v334
    %v336 = vpop.f32.mrb[0].mxu0
    %337 = vmatprep.mubr.bf16.mxu0 0
    %338 = vmatmul.mubr.bf16.gmra.mrb[0].mxu0 %v120
    %v339 = vpop.f32.mrb[0].mxu0
    %v340 = vadd.f32 %v143, %v339
    %v341 = vpop.f32.mrb[0].mxu0
    %v342 = vpop.f32.mrb[0].mxu0
    %v343 = vadd.f32 %v143, %v342
    %v344 = vpop.f32.mrb[0].mxu0
    %345 = vmatprep.mubr.bf16.mxu0 0
    %346 = vmatmul.mubr.bf16.gmra.mrb[0].mxu0 %v121
    %v347 = vpop.f32.mrb[0].mxu0
    %v348 = vadd.f32 %v143, %v347
    %v349 = vpop.f32.mrb[0].mxu0
    %v350 = vpop.f32.mrb[0].mxu0
    %v351 = vadd.f32 %v143, %v350
    %v352 = vpop.f32.mrb[0].mxu0
    %353 = vdwg.mxu0
    %v354 = vmax.f32 %v228, 0.0
    %v355 = vmax.f32 %v231, 0.0
    %v356 = vmax.f32 %v236, 0.0
    %v357 = vmax.f32 %v239, 0.0
    %v358 = vmax.f32 %v244, 0.0
    %v359 = vmax.f32 %v247, 0.0
    %v360 = vmax.f32 %v252, 0.0
    %v361 = vmax.f32 %v255, 0.0
    %v362 = vmax.f32 %v260, 0.0
    %v363 = vmax.f32 %v263, 0.0
    %v364 = vmax.f32 %v268, 0.0
    %v365 = vmax.f32 %v271, 0.0
    %v366 = vmax.f32 %v276, 0.0
    %v367 = vmax.f32 %v279, 0.0
    %v368 = vmax.f32 %v284, 0.0
    %v369 = vmax.f32 %v287, 0.0
    %v370 = vmax.f32 %v292, 0.0
    %v371 = vmax.f32 %v295, 0.0
    %v372 = vmax.f32 %v300, 0.0
    %v373 = vmax.f32 %v303, 0.0
    %v374 = vmax.f32 %v308, 0.0
    %v375 = vmax.f32 %v311, 0.0
    %v376 = vmax.f32 %v316, 0.0
    %v377 = vmax.f32 %v319, 0.0
    %v378 = vmax.f32 %v324, 0.0
    %v379 = vmax.f32 %v327, 0.0
    %v380 = vmax.f32 %v332, 0.0
    %v381 = vmax.f32 %v335, 0.0
    %v382 = vmax.f32 %v340, 0.0
    %v383 = vmax.f32 %v343, 0.0
    %v384 = vmax.f32 %v348, 0.0
    %v385 = vmax.f32 %v351, 0.0
    %v386 = vpack.c.bf16 %v355, %v354
    %v387 = vpack.c.bf16 %v357, %v356
    %v388 = vpack.c.bf16 %v359, %v358
    %v389 = vpack.c.bf16 %v361, %v360
    %v390 = vpack.c.bf16 %v363, %v362
    %v391 = vpack.c.bf16 %v365, %v364
    %v392 = vpack.c.bf16 %v367, %v366
    %v393 = vpack.c.bf16 %v369, %v368
    %v394 = vpack.c.bf16 %v371, %v370
    %v395 = vpack.c.bf16 %v373, %v372
    %v396 = vpack.c.bf16 %v375, %v374
    %v397 = vpack.c.bf16 %v377, %v376
    %v398 = vpack.c.bf16 %v379, %v378
    %v399 = vpack.c.bf16 %v381, %v380
    %v400 = vpack.c.bf16 %v383, %v382
    %v401 = vpack.c.bf16 %v385, %v384
    %v402 = vld [vmem:[%s3] sm:$0xff]
    %v403 = vld [vmem:[%s3 + $0x8] sm:$0xff]
    %v404 = vld [vmem:[%s3 + $0x10] sm:$0xff]
    %v405 = vld [vmem:[%s3 + $0x18] sm:$0xff]
    %v406 = vld [vmem:[%s3 + $0x20] sm:$0xff]
    %v407 = vld [vmem:[%s3 + $0x28] sm:$0xff]
    %v408 = vld [vmem:[%s3 + $0x30] sm:$0xff]
    %v409 = vld [vmem:[%s3 + $0x38] sm:$0xff]
    %v410 = vld [vmem:[%s3 + $0x40] sm:$0xff]
    %v411 = vld [vmem:[%s3 + $0x48] sm:$0xff]
    %v412 = vld [vmem:[%s3 + $0x50] sm:$0xff]
    %v413 = vld [vmem:[%s3 + $0x58] sm:$0xff]
    %v414 = vld [vmem:[%s3 + $0x60] sm:$0xff]
    %v415 = vld [vmem:[%s3 + $0x68] sm:$0xff]
    %v416 = vld [vmem:[%s3 + $0x70] sm:$0xff]
    %v417 = vld [vmem:[%s3 + $0x78] sm:$0xff]
    %v418 = vld [vmem:[%s3 + $0x80] sm:$0xff]
    %v419 = vld [vmem:[%s3 + $0x88] sm:$0xff]
    %v420 = vld [vmem:[%s3 + $0x90] sm:$0xff]
    %v421 = vld [vmem:[%s3 + $0x98] sm:$0xff]
    %v422 = vld [vmem:[%s3 + $0xa0] sm:$0xff]
    %v423 = vld [vmem:[%s3 + $0xa8] sm:$0xff]
    %v424 = vld [vmem:[%s3 + $0xb0] sm:$0xff]
    %v425 = vld [vmem:[%s3 + $0xb8] sm:$0xff]
    %v426 = vld [vmem:[%s3 + $0xc0] sm:$0xff]
    %v427 = vld [vmem:[%s3 + $0xc8] sm:$0xff]
    %v428 = vld [vmem:[%s3 + $0xd0] sm:$0xff]
    %v429 = vld [vmem:[%s3 + $0xd8] sm:$0xff]
    %v430 = vld [vmem:[%s3 + $0xe0] sm:$0xff]
    %v431 = vld [vmem:[%s3 + $0xe8] sm:$0xff]
    %v432 = vld [vmem:[%s3 + $0xf0] sm:$0xff]
    %v433 = vld [vmem:[%s3 + $0xf8] sm:$0xff]
    %v434 = vld [vmem:[%s4] sm:$0xf]
    %v436 = vlaneseq
    %v437 = vshrl.u32 %v436, 7
    %v438 = vsub.s32 0, %v437
    %v439 = vrot.slane %v434, %v438
    %v440 = vlaneseq
    %v441 = vshrl.u32 %v440, 7
    %v442 = vsub.s32 1, %v441
    %v443 = vrot.slane %v434, %v442
    %v444 = vlaneseq
    %v445 = vshrl.u32 %v444, 7
    %v446 = vsub.s32 2, %v445
    %v447 = vrot.slane %v434, %v446
    %v448 = vlaneseq
    %v449 = vshrl.u32 %v448, 7
    %v450 = vsub.s32 3, %v449
    %v451 = vrot.slane %v434, %v450
    %v488 = vunpack.c.l.b16 %v402
    %v489 = vunpack.c.h.b16 %v402
    %v490 = vunpack.c.l.b16 %v403
    %v491 = vunpack.c.h.b16 %v403
    %v492 = vunpack.c.l.b16 %v404
    %v493 = vunpack.c.h.b16 %v404
    %v494 = vunpack.c.l.b16 %v405
    %v495 = vunpack.c.h.b16 %v405
    %v496 = vunpack.c.l.b16 %v406
    %v497 = vunpack.c.h.b16 %v406
    %v498 = vunpack.c.l.b16 %v407
    %v499 = vunpack.c.h.b16 %v407
    %v500 = vunpack.c.l.b16 %v408
    %v501 = vunpack.c.h.b16 %v408
    %v502 = vunpack.c.l.b16 %v409
    %v503 = vunpack.c.h.b16 %v409
    %v504 = vunpack.c.l.b16 %v410
    %v505 = vunpack.c.h.b16 %v410
    %v506 = vunpack.c.l.b16 %v411
    %v507 = vunpack.c.h.b16 %v411
    %v508 = vunpack.c.l.b16 %v412
    %v509 = vunpack.c.h.b16 %v412
    %v510 = vunpack.c.l.b16 %v413
    %v511 = vunpack.c.h.b16 %v413
    %v512 = vunpack.c.l.b16 %v414
    %v513 = vunpack.c.h.b16 %v414
    %v514 = vunpack.c.l.b16 %v415
    %v515 = vunpack.c.h.b16 %v415
    %v516 = vunpack.c.l.b16 %v416
    %v517 = vunpack.c.h.b16 %v416
    %v518 = vunpack.c.l.b16 %v417
    %v519 = vunpack.c.h.b16 %v417
    %v520 = vunpack.c.l.b16 %v418
    %v521 = vunpack.c.h.b16 %v418
    %v522 = vunpack.c.l.b16 %v419
    %v523 = vunpack.c.h.b16 %v419
    %v524 = vunpack.c.l.b16 %v420
    %v525 = vunpack.c.h.b16 %v420
    %v526 = vunpack.c.l.b16 %v421
    %v527 = vunpack.c.h.b16 %v421
    %v528 = vunpack.c.l.b16 %v422
    %v529 = vunpack.c.h.b16 %v422
    %v530 = vunpack.c.l.b16 %v423
    %v531 = vunpack.c.h.b16 %v423
    %v532 = vunpack.c.l.b16 %v424
    %v533 = vunpack.c.h.b16 %v424
    %v534 = vunpack.c.l.b16 %v425
    %v535 = vunpack.c.h.b16 %v425
    %v536 = vunpack.c.l.b16 %v426
    %v537 = vunpack.c.h.b16 %v426
    %v538 = vunpack.c.l.b16 %v427
    %v539 = vunpack.c.h.b16 %v427
    %v540 = vunpack.c.l.b16 %v428
    %v541 = vunpack.c.h.b16 %v428
    %v542 = vunpack.c.l.b16 %v429
    %v543 = vunpack.c.h.b16 %v429
    %v544 = vunpack.c.l.b16 %v430
    %v545 = vunpack.c.h.b16 %v430
    %v546 = vunpack.c.l.b16 %v431
    %v547 = vunpack.c.h.b16 %v431
    %v548 = vunpack.c.l.b16 %v432
    %v549 = vunpack.c.h.b16 %v432
    %v550 = vunpack.c.l.b16 %v433
    %v551 = vunpack.c.h.b16 %v433
    %v552 = vpack.c.b16 %v492, %v488
    %v553 = vpack.c.b16 %v493, %v489
    %v554 = vpack.c.b16 %v494, %v490
    %v555 = vpack.c.b16 %v495, %v491
    %v556 = vpack.c.b16 %v500, %v496
    %v557 = vpack.c.b16 %v501, %v497
    %v558 = vpack.c.b16 %v502, %v498
    %v559 = vpack.c.b16 %v503, %v499
    %v560 = vpack.c.b16 %v508, %v504
    %v561 = vpack.c.b16 %v509, %v505
    %v562 = vpack.c.b16 %v510, %v506
    %v563 = vpack.c.b16 %v511, %v507
    %v564 = vpack.c.b16 %v516, %v512
    %v565 = vpack.c.b16 %v517, %v513
    %v566 = vpack.c.b16 %v518, %v514
    %v567 = vpack.c.b16 %v519, %v515
    %v568 = vpack.c.b16 %v524, %v520
    %v569 = vpack.c.b16 %v525, %v521
    %v570 = vpack.c.b16 %v526, %v522
    %v571 = vpack.c.b16 %v527, %v523
    %v572 = vpack.c.b16 %v532, %v528
    %v573 = vpack.c.b16 %v533, %v529
    %v574 = vpack.c.b16 %v534, %v530
    %v575 = vpack.c.b16 %v535, %v531
    %v576 = vpack.c.b16 %v540, %v536
    %v577 = vpack.c.b16 %v541, %v537
    %v578 = vpack.c.b16 %v542, %v538
    %v579 = vpack.c.b16 %v543, %v539
    %v580 = vpack.c.b16 %v548, %v544
    %v581 = vpack.c.b16 %v549, %v545
    %v582 = vpack.c.b16 %v550, %v546
    %v583 = vpack.c.b16 %v551, %v547
    %616 = vmatprep.subr.bf16.mxu0 %v553
    %617 = vmatpush1.bf16.msra.mxu0 %v552
    %618 = vmatprep.subr.bf16.mxu0 %v557
    %619 = vmatpush1.bf16.msra.mxu0 %v556
    %620 = vmatprep.subr.bf16.mxu0 %v561
    %621 = vmatpush1.bf16.msra.mxu0 %v560
    %622 = vmatprep.subr.bf16.mxu0 %v565
    %623 = vmatpush1.bf16.msra.mxu0 %v564
    %624 = vmatprep.subr.bf16.mxu0 %v569
    %625 = vmatpush1.bf16.msra.mxu0 %v568
    %626 = vmatprep.subr.bf16.mxu0 %v573
    %627 = vmatpush1.bf16.msra.mxu0 %v572
    %628 = vmatprep.subr.bf16.mxu0 %v577
    %629 = vmatpush1.bf16.msra.mxu0 %v576
    %630 = vmatprep.subr.bf16.mxu0 %v581
    %631 = vmatpush1.bf16.msra.mxu0 %v580
    %632 = vmatprep.subr.bf16.mxu0 0
    %633 = vmatpush1.bf16.msra.mxu0 0
    %634 = vmatprep.subr.bf16.mxu0 0
    %635 = vmatpush1.bf16.msra.mxu0 0
    %636 = vmatprep.subr.bf16.mxu0 0
    %637 = vmatpush1.bf16.msra.mxu0 0
    %638 = vmatprep.subr.bf16.mxu0 0
    %639 = vmatpush1.bf16.msra.mxu0 0
    %640 = vmatprep.subr.bf16.mxu0 0
    %641 = vmatpush1.bf16.msra.mxu0 0
    %642 = vmatprep.subr.bf16.mxu0 0
    %643 = vmatpush1.bf16.msra.mxu0 0
    %644 = vmatprep.subr.bf16.mxu0 0
    %645 = vmatpush1.bf16.msra.mxu0 0
    %646 = vmatprep.subr.bf16.mxu0 0
    %647 = vmatpush1.bf16.msra.mxu0 0
    %648 = vmatprep.mubr.bf16.mxu0 0
    %649 = vmatmul.mubr.bf16.gmra.mrb[0].mxu0 %v386
    %v650 = vpop.f32.mrb[0].mxu0
    %v651 = vadd.f32 %v439, %v650
    %v652 = vpop.f32.mrb[0].mxu0
    %v653 = vadd.f32 %v443, %v652
    %v654 = vpop.f32.mrb[0].mxu0
    %v655 = vadd.f32 %v439, %v654
    %v656 = vpop.f32.mrb[0].mxu0
    %v657 = vadd.f32 %v443, %v656
    %658 = vmatprep.mubr.bf16.mxu0 0
    %659 = vmatmul.mubr.bf16.gmra.mrb[0].mxu0 %v387
    %v660 = vpop.f32.mrb[0].mxu0
    %v661 = vadd.f32 %v439, %v660
    %v662 = vpop.f32.mrb[0].mxu0
    %v663 = vadd.f32 %v443, %v662
    %v664 = vpop.f32.mrb[0].mxu0
    %v665 = vadd.f32 %v439, %v664
    %v666 = vpop.f32.mrb[0].mxu0
    %v667 = vadd.f32 %v443, %v666
    %668 = vmatprep.mubr.bf16.mxu0 0
    %669 = vmatmul.mubr.bf16.gmra.mrb[0].mxu0 %v388
    %v670 = vpop.f32.mrb[0].mxu0
    %v671 = vadd.f32 %v439, %v670
    %v672 = vpop.f32.mrb[0].mxu0
    %v673 = vadd.f32 %v443, %v672
    %v674 = vpop.f32.mrb[0].mxu0
    %v675 = vadd.f32 %v439, %v674
    %v676 = vpop.f32.mrb[0].mxu0
    %v677 = vadd.f32 %v443, %v676
    %678 = vmatprep.mubr.bf16.mxu0 0
    %679 = vmatmul.mubr.bf16.gmra.mrb[0].mxu0 %v389
    %v680 = vpop.f32.mrb[0].mxu0
    %v681 = vadd.f32 %v439, %v680
    %v682 = vpop.f32.mrb[0].mxu0
    %v683 = vadd.f32 %v443, %v682
    %v684 = vpop.f32.mrb[0].mxu0
    %v685 = vadd.f32 %v439, %v684
    %v686 = vpop.f32.mrb[0].mxu0
    %v687 = vadd.f32 %v443, %v686
    %688 = vmatprep.mubr.bf16.mxu0 0
    %689 = vmatmul.mubr.bf16.gmra.mrb[0].mxu0 %v390
    %v690 = vpop.f32.mrb[0].mxu0
    %v691 = vadd.f32 %v439, %v690
    %v692 = vpop.f32.mrb[0].mxu0
    %v693 = vadd.f32 %v443, %v692
    %v694 = vpop.f32.mrb[0].mxu0
    %v695 = vadd.f32 %v439, %v694
    %v696 = vpop.f32.mrb[0].mxu0
    %v697 = vadd.f32 %v443, %v696
    %698 = vmatprep.mubr.bf16.mxu0 0
    %699 = vmatmul.mubr.bf16.gmra.mrb[0].mxu0 %v391
    %v700 = vpop.f32.mrb[0].mxu0
    %v701 = vadd.f32 %v439, %v700
    %v702 = vpop.f32.mrb[0].mxu0
    %v703 = vadd.f32 %v443, %v702
    %v704 = vpop.f32.mrb[0].mxu0
    %v705 = vadd.f32 %v439, %v704
    %v706 = vpop.f32.mrb[0].mxu0
    %v707 = vadd.f32 %v443, %v706
    %708 = vmatprep.mubr.bf16.mxu0 0
    %709 = vmatmul.mubr.bf16.gmra.mrb[0].mxu0 %v392
    %v710 = vpop.f32.mrb[0].mxu0
    %v711 = vadd.f32 %v439, %v710
    %v712 = vpop.f32.mrb[0].mxu0
    %v713 = vadd.f32 %v443, %v712
    %v714 = vpop.f32.mrb[0].mxu0
    %v715 = vadd.f32 %v439, %v714
    %v716 = vpop.f32.mrb[0].mxu0
    %v717 = vadd.f32 %v443, %v716
    %718 = vmatprep.mubr.bf16.mxu0 0
    %719 = vmatmul.mubr.bf16.gmra.mrb[0].mxu0 %v393
    %v720 = vpop.f32.mrb[0].mxu0
    %v721 = vadd.f32 %v439, %v720
    %v722 = vpop.f32.mrb[0].mxu0
    %v723 = vadd.f32 %v443, %v722
    %v724 = vpop.f32.mrb[0].mxu0
    %v725 = vadd.f32 %v439, %v724
    %v726 = vpop.f32.mrb[0].mxu0
    %v727 = vadd.f32 %v443, %v726
    %728 = vmatprep.mubr.bf16.mxu0 0
    %729 = vmatmul.mubr.bf16.gmra.mrb[0].mxu0 %v394
    %v730 = vpop.f32.mrb[0].mxu0
    %v731 = vadd.f32 %v439, %v730
    %v732 = vpop.f32.mrb[0].mxu0
    %v733 = vadd.f32 %v443, %v732
    %v734 = vpop.f32.mrb[0].mxu0
    %v735 = vadd.f32 %v439, %v734
    %v736 = vpop.f32.mrb[0].mxu0
    %v737 = vadd.f32 %v443, %v736
    %738 = vmatprep.mubr.bf16.mxu0 0
    %739 = vmatmul.mubr.bf16.gmra.mrb[0].mxu0 %v395
    %v740 = vpop.f32.mrb[0].mxu0
    %v741 = vadd.f32 %v439, %v740
    %v742 = vpop.f32.mrb[0].mxu0
    %v743 = vadd.f32 %v443, %v742
    %v744 = vpop.f32.mrb[0].mxu0
    %v745 = vadd.f32 %v439, %v744
    %v746 = vpop.f32.mrb[0].mxu0
    %v747 = vadd.f32 %v443, %v746
    %748 = vmatprep.mubr.bf16.mxu0 0
    %749 = vmatmul.mubr.bf16.gmra.mrb[0].mxu0 %v396
    %v750 = vpop.f32.mrb[0].mxu0
    %v751 = vadd.f32 %v439, %v750
    %v752 = vpop.f32.mrb[0].mxu0
    %v753 = vadd.f32 %v443, %v752
    %v754 = vpop.f32.mrb[0].mxu0
    %v755 = vadd.f32 %v439, %v754
    %v756 = vpop.f32.mrb[0].mxu0
    %v757 = vadd.f32 %v443, %v756
    %758 = vmatprep.mubr.bf16.mxu0 0
    %759 = vmatmul.mubr.bf16.gmra.mrb[0].mxu0 %v397
    %v760 = vpop.f32.mrb[0].mxu0
    %v761 = vadd.f32 %v439, %v760
    %v762 = vpop.f32.mrb[0].mxu0
    %v763 = vadd.f32 %v443, %v762
    %v764 = vpop.f32.mrb[0].mxu0
    %v765 = vadd.f32 %v439, %v764
    %v766 = vpop.f32.mrb[0].mxu0
    %v767 = vadd.f32 %v443, %v766
    %768 = vmatprep.mubr.bf16.mxu0 0
    %769 = vmatmul.mubr.bf16.gmra.mrb[0].mxu0 %v398
    %v770 = vpop.f32.mrb[0].mxu0
    %v771 = vadd.f32 %v439, %v770
    %v772 = vpop.f32.mrb[0].mxu0
    %v773 = vadd.f32 %v443, %v772
    %v774 = vpop.f32.mrb[0].mxu0
    %v775 = vadd.f32 %v439, %v774
    %v776 = vpop.f32.mrb[0].mxu0
    %v777 = vadd.f32 %v443, %v776
    %778 = vmatprep.mubr.bf16.mxu0 0
    %779 = vmatmul.mubr.bf16.gmra.mrb[0].mxu0 %v399
    %v780 = vpop.f32.mrb[0].mxu0
    %v781 = vadd.f32 %v439, %v780
    %v782 = vpop.f32.mrb[0].mxu0
    %v783 = vadd.f32 %v443, %v782
    %v784 = vpop.f32.mrb[0].mxu0
    %v785 = vadd.f32 %v439, %v784
    %v786 = vpop.f32.mrb[0].mxu0
    %v787 = vadd.f32 %v443, %v786
    %788 = vmatprep.mubr.bf16.mxu0 0
    %789 = vmatmul.mubr.bf16.gmra.mrb[0].mxu0 %v400
    %v790 = vpop.f32.mrb[0].mxu0
    %v791 = vadd.f32 %v439, %v790
    %v792 = vpop.f32.mrb[0].mxu0
    %v793 = vadd.f32 %v443, %v792
    %v794 = vpop.f32.mrb[0].mxu0
    %v795 = vadd.f32 %v439, %v794
    %v796 = vpop.f32.mrb[0].mxu0
    %v797 = vadd.f32 %v443, %v796
    %798 = vmatprep.mubr.bf16.mxu0 0
    %799 = vmatmul.mubr.bf16.gmra.mrb[0].mxu0 %v401
    %v800 = vpop.f32.mrb[0].mxu0
    %v801 = vadd.f32 %v439, %v800
    %v802 = vpop.f32.mrb[0].mxu0
    %v803 = vadd.f32 %v443, %v802
    %v804 = vpop.f32.mrb[0].mxu0
    %v805 = vadd.f32 %v439, %v804
    %v806 = vpop.f32.mrb[0].mxu0
    %v807 = vadd.f32 %v443, %v806
    %808 = vdwg.mxu0
    %809 = vmatprep.subr.bf16.mxu0 %v555
    %810 = vmatpush1.bf16.msra.mxu0 %v554
    %811 = vmatprep.subr.bf16.mxu0 %v559
    %812 = vmatpush1.bf16.msra.mxu0 %v558
    %813 = vmatprep.subr.bf16.mxu0 %v563
    %814 = vmatpush1.bf16.msra.mxu0 %v562
    %815 = vmatprep.subr.bf16.mxu0 %v567
    %816 = vmatpush1.bf16.msra.mxu0 %v566
    %817 = vmatprep.subr.bf16.mxu0 %v571
    %818 = vmatpush1.bf16.msra.mxu0 %v570
    %819 = vmatprep.subr.bf16.mxu0 %v575
    %820 = vmatpush1.bf16.msra.mxu0 %v574
    %821 = vmatprep.subr.bf16.mxu0 %v579
    %822 = vmatpush1.bf16.msra.mxu0 %v578
    %823 = vmatprep.subr.bf16.mxu0 %v583
    %824 = vmatpush1.bf16.msra.mxu0 %v582
    %825 = vmatprep.subr.bf16.mxu0 0
    %826 = vmatpush1.bf16.msra.mxu0 0
    %827 = vmatprep.subr.bf16.mxu0 0
    %828 = vmatpush1.bf16.msra.mxu0 0
    %829 = vmatprep.subr.bf16.mxu0 0
    %830 = vmatpush1.bf16.msra.mxu0 0
    %831 = vmatprep.subr.bf16.mxu0 0
    %832 = vmatpush1.bf16.msra.mxu0 0
    %833 = vmatprep.subr.bf16.mxu0 0
    %834 = vmatpush1.bf16.msra.mxu0 0
    %835 = vmatprep.subr.bf16.mxu0 0
    %836 = vmatpush1.bf16.msra.mxu0 0
    %837 = vmatprep.subr.bf16.mxu0 0
    %838 = vmatpush1.bf16.msra.mxu0 0
    %839 = vmatprep.subr.bf16.mxu0 0
    %840 = vmatpush1.bf16.msra.mxu0 0
    %841 = vmatprep.mubr.bf16.mxu0 0
    %842 = vmatmul.mubr.bf16.gmra.mrb[0].mxu0 %v386
    %v843 = vpop.f32.mrb[0].mxu0
    %v844 = vadd.f32 %v447, %v843
    %v845 = vpop.f32.mrb[0].mxu0
    %v846 = vadd.f32 %v451, %v845
    %v847 = vpop.f32.mrb[0].mxu0
    %v848 = vadd.f32 %v447, %v847
    %v849 = vpop.f32.mrb[0].mxu0
    %v850 = vadd.f32 %v451, %v849
    %851 = vmatprep.mubr.bf16.mxu0 0
    %852 = vmatmul.mubr.bf16.gmra.mrb[0].mxu0 %v387
    %v853 = vpop.f32.mrb[0].mxu0
    %v854 = vadd.f32 %v447, %v853
    %v855 = vpop.f32.mrb[0].mxu0
    %v856 = vadd.f32 %v451, %v855
    %v857 = vpop.f32.mrb[0].mxu0
    %v858 = vadd.f32 %v447, %v857
    %v859 = vpop.f32.mrb[0].mxu0
    %v860 = vadd.f32 %v451, %v859
    %861 = vmatprep.mubr.bf16.mxu0 0
    %862 = vmatmul.mubr.bf16.gmra.mrb[0].mxu0 %v388
    %v863 = vpop.f32.mrb[0].mxu0
    %v864 = vadd.f32 %v447, %v863
    %v865 = vpop.f32.mrb[0].mxu0
    %v866 = vadd.f32 %v451, %v865
    %v867 = vpop.f32.mrb[0].mxu0
    %v868 = vadd.f32 %v447, %v867
    %v869 = vpop.f32.mrb[0].mxu0
    %v870 = vadd.f32 %v451, %v869
    %871 = vmatprep.mubr.bf16.mxu0 0
    %872 = vmatmul.mubr.bf16.gmra.mrb[0].mxu0 %v389
    %v873 = vpop.f32.mrb[0].mxu0
    %v874 = vadd.f32 %v447, %v873
    %v875 = vpop.f32.mrb[0].mxu0
    %v876 = vadd.f32 %v451, %v875
    %v877 = vpop.f32.mrb[0].mxu0
    %v878 = vadd.f32 %v447, %v877
    %v879 = vpop.f32.mrb[0].mxu0
    %v880 = vadd.f32 %v451, %v879
    %881 = vmatprep.mubr.bf16.mxu0 0
    %882 = vmatmul.mubr.bf16.gmra.mrb[0].mxu0 %v390
    %v883 = vpop.f32.mrb[0].mxu0
    %v884 = vadd.f32 %v447, %v883
    %v885 = vpop.f32.mrb[0].mxu0
    %v886 = vadd.f32 %v451, %v885
    %v887 = vpop.f32.mrb[0].mxu0
    %v888 = vadd.f32 %v447, %v887
    %v889 = vpop.f32.mrb[0].mxu0
    %v890 = vadd.f32 %v451, %v889
    %891 = vmatprep.mubr.bf16.mxu0 0
    %892 = vmatmul.mubr.bf16.gmra.mrb[0].mxu0 %v391
    %v893 = vpop.f32.mrb[0].mxu0
    %v894 = vadd.f32 %v447, %v893
    %v895 = vpop.f32.mrb[0].mxu0
    %v896 = vadd.f32 %v451, %v895
    %v897 = vpop.f32.mrb[0].mxu0
    %v898 = vadd.f32 %v447, %v897
    %v899 = vpop.f32.mrb[0].mxu0
    %v900 = vadd.f32 %v451, %v899
    %901 = vmatprep.mubr.bf16.mxu0 0
    %902 = vmatmul.mubr.bf16.gmra.mrb[0].mxu0 %v392
    %v903 = vpop.f32.mrb[0].mxu0
    %v904 = vadd.f32 %v447, %v903
    %v905 = vpop.f32.mrb[0].mxu0
    %v906 = vadd.f32 %v451, %v905
    %v907 = vpop.f32.mrb[0].mxu0
    %v908 = vadd.f32 %v447, %v907
    %v909 = vpop.f32.mrb[0].mxu0
    %v910 = vadd.f32 %v451, %v909
    %911 = vmatprep.mubr.bf16.mxu0 0
    %912 = vmatmul.mubr.bf16.gmra.mrb[0].mxu0 %v393
    %v913 = vpop.f32.mrb[0].mxu0
    %v914 = vadd.f32 %v447, %v913
    %v915 = vpop.f32.mrb[0].mxu0
    %v916 = vadd.f32 %v451, %v915
    %v917 = vpop.f32.mrb[0].mxu0
    %v918 = vadd.f32 %v447, %v917
    %v919 = vpop.f32.mrb[0].mxu0
    %v920 = vadd.f32 %v451, %v919
    %921 = vmatprep.mubr.bf16.mxu0 0
    %922 = vmatmul.mubr.bf16.gmra.mrb[0].mxu0 %v394
    %v923 = vpop.f32.mrb[0].mxu0
    %v924 = vadd.f32 %v447, %v923
    %v925 = vpop.f32.mrb[0].mxu0
    %v926 = vadd.f32 %v451, %v925
    %v927 = vpop.f32.mrb[0].mxu0
    %v928 = vadd.f32 %v447, %v927
    %v929 = vpop.f32.mrb[0].mxu0
    %v930 = vadd.f32 %v451, %v929
    %931 = vmatprep.mubr.bf16.mxu0 0
    %932 = vmatmul.mubr.bf16.gmra.mrb[0].mxu0 %v395
    %v933 = vpop.f32.mrb[0].mxu0
    %v934 = vadd.f32 %v447, %v933
    %v935 = vpop.f32.mrb[0].mxu0
    %v936 = vadd.f32 %v451, %v935
    %v937 = vpop.f32.mrb[0].mxu0
    %v938 = vadd.f32 %v447, %v937
    %v939 = vpop.f32.mrb[0].mxu0
    %v940 = vadd.f32 %v451, %v939
    %941 = vmatprep.mubr.bf16.mxu0 0
    %942 = vmatmul.mubr.bf16.gmra.mrb[0].mxu0 %v396
    %v943 = vpop.f32.mrb[0].mxu0
    %v944 = vadd.f32 %v447, %v943
    %v945 = vpop.f32.mrb[0].mxu0
    %v946 = vadd.f32 %v451, %v945
    %v947 = vpop.f32.mrb[0].mxu0
    %v948 = vadd.f32 %v447, %v947
    %v949 = vpop.f32.mrb[0].mxu0
    %v950 = vadd.f32 %v451, %v949
    %951 = vmatprep.mubr.bf16.mxu0 0
    %952 = vmatmul.mubr.bf16.gmra.mrb[0].mxu0 %v397
    %v953 = vpop.f32.mrb[0].mxu0
    %v954 = vadd.f32 %v447, %v953
    %v955 = vpop.f32.mrb[0].mxu0
    %v956 = vadd.f32 %v451, %v955
    %v957 = vpop.f32.mrb[0].mxu0
    %v958 = vadd.f32 %v447, %v957
    %v959 = vpop.f32.mrb[0].mxu0
    %v960 = vadd.f32 %v451, %v959
    %961 = vmatprep.mubr.bf16.mxu0 0
    %962 = vmatmul.mubr.bf16.gmra.mrb[0].mxu0 %v398
    %v963 = vpop.f32.mrb[0].mxu0
    %v964 = vadd.f32 %v447, %v963
    %v965 = vpop.f32.mrb[0].mxu0
    %v966 = vadd.f32 %v451, %v965
    %v967 = vpop.f32.mrb[0].mxu0
    %v968 = vadd.f32 %v447, %v967
    %v969 = vpop.f32.mrb[0].mxu0
    %v970 = vadd.f32 %v451, %v969
    %971 = vmatprep.mubr.bf16.mxu0 0
    %972 = vmatmul.mubr.bf16.gmra.mrb[0].mxu0 %v399
    %v973 = vpop.f32.mrb[0].mxu0
    %v974 = vadd.f32 %v447, %v973
    %v975 = vpop.f32.mrb[0].mxu0
    %v976 = vadd.f32 %v451, %v975
    %v977 = vpop.f32.mrb[0].mxu0
    %v978 = vadd.f32 %v447, %v977
    %v979 = vpop.f32.mrb[0].mxu0
    %v980 = vadd.f32 %v451, %v979
    %981 = vmatprep.mubr.bf16.mxu0 0
    %982 = vmatmul.mubr.bf16.gmra.mrb[0].mxu0 %v400
    %v983 = vpop.f32.mrb[0].mxu0
    %v984 = vadd.f32 %v447, %v983
    %v985 = vpop.f32.mrb[0].mxu0
    %v986 = vadd.f32 %v451, %v985
    %v987 = vpop.f32.mrb[0].mxu0
    %v988 = vadd.f32 %v447, %v987
    %v989 = vpop.f32.mrb[0].mxu0
    %v990 = vadd.f32 %v451, %v989
    %991 = vmatprep.mubr.bf16.mxu0 0
    %992 = vmatmul.mubr.bf16.gmra.mrb[0].mxu0 %v401
    %v993 = vpop.f32.mrb[0].mxu0
    %v994 = vadd.f32 %v447, %v993
    %v995 = vpop.f32.mrb[0].mxu0
    %v996 = vadd.f32 %v451, %v995
    %v997 = vpop.f32.mrb[0].mxu0
    %v998 = vadd.f32 %v447, %v997
    %v999 = vpop.f32.mrb[0].mxu0
    %v1000 = vadd.f32 %v451, %v999
    %1001 = vdwg.mxu0
    %v1002 = vmax.f32 %v651, 0.0
    %v1003 = vmax.f32 %v653, 0.0
    %v1004 = vmax.f32 %v844, 0.0
    %v1005 = vmax.f32 %v846, 0.0
    %v1006 = vmax.f32 %v655, 0.0
    %v1007 = vmax.f32 %v657, 0.0
    %v1008 = vmax.f32 %v848, 0.0
    %v1009 = vmax.f32 %v850, 0.0
    %v1010 = vmax.f32 %v661, 0.0
    %v1011 = vmax.f32 %v663, 0.0
    %v1012 = vmax.f32 %v854, 0.0
    %v1013 = vmax.f32 %v856, 0.0
    %v1014 = vmax.f32 %v665, 0.0
    %v1015 = vmax.f32 %v667, 0.0
    %v1016 = vmax.f32 %v858, 0.0
    %v1017 = vmax.f32 %v860, 0.0
    %v1018 = vmax.f32 %v671, 0.0
    %v1019 = vmax.f32 %v673, 0.0
    %v1020 = vmax.f32 %v864, 0.0
    %v1021 = vmax.f32 %v866, 0.0
    %v1022 = vmax.f32 %v675, 0.0
    %v1023 = vmax.f32 %v677, 0.0
    %v1024 = vmax.f32 %v868, 0.0
    %v1025 = vmax.f32 %v870, 0.0
    %v1026 = vmax.f32 %v681, 0.0
    %v1027 = vmax.f32 %v683, 0.0
    %v1028 = vmax.f32 %v874, 0.0
    %v1029 = vmax.f32 %v876, 0.0
    %v1030 = vmax.f32 %v685, 0.0
    %v1031 = vmax.f32 %v687, 0.0
    %v1032 = vmax.f32 %v878, 0.0
    %v1033 = vmax.f32 %v880, 0.0
    %v1034 = vmax.f32 %v691, 0.0
    %v1035 = vmax.f32 %v693, 0.0
    %v1036 = vmax.f32 %v884, 0.0
    %v1037 = vmax.f32 %v886, 0.0
    %v1038 = vmax.f32 %v695, 0.0
    %v1039 = vmax.f32 %v697, 0.0
    %v1040 = vmax.f32 %v888, 0.0
    %v1041 = vmax.f32 %v890, 0.0
    %v1042 = vmax.f32 %v701, 0.0
    %v1043 = vmax.f32 %v703, 0.0
    %v1044 = vmax.f32 %v894, 0.0
    %v1045 = vmax.f32 %v896, 0.0
    %v1046 = vmax.f32 %v705, 0.0
    %v1047 = vmax.f32 %v707, 0.0
    %v1048 = vmax.f32 %v898, 0.0
    %v1049 = vmax.f32 %v900, 0.0
    %v1050 = vmax.f32 %v711, 0.0
    %v1051 = vmax.f32 %v713, 0.0
    %v1052 = vmax.f32 %v904, 0.0
    %v1053 = vmax.f32 %v906, 0.0
    %v1054 = vmax.f32 %v715, 0.0
    %v1055 = vmax.f32 %v717, 0.0
    %v1056 = vmax.f32 %v908, 0.0
    %v1057 = vmax.f32 %v910, 0.0
    %v1058 = vmax.f32 %v721, 0.0
    %v1059 = vmax.f32 %v723, 0.0
    %v1060 = vmax.f32 %v914, 0.0
    %v1061 = vmax.f32 %v916, 0.0
    %v1062 = vmax.f32 %v725, 0.0
    %v1063 = vmax.f32 %v727, 0.0
    %v1064 = vmax.f32 %v918, 0.0
    %v1065 = vmax.f32 %v920, 0.0
    %v1066 = vmax.f32 %v731, 0.0
    %v1067 = vmax.f32 %v733, 0.0
    %v1068 = vmax.f32 %v924, 0.0
    %v1069 = vmax.f32 %v926, 0.0
    %v1070 = vmax.f32 %v735, 0.0
    %v1071 = vmax.f32 %v737, 0.0
    %v1072 = vmax.f32 %v928, 0.0
    %v1073 = vmax.f32 %v930, 0.0
    %v1074 = vmax.f32 %v741, 0.0
    %v1075 = vmax.f32 %v743, 0.0
    %v1076 = vmax.f32 %v934, 0.0
    %v1077 = vmax.f32 %v936, 0.0
    %v1078 = vmax.f32 %v745, 0.0
    %v1079 = vmax.f32 %v747, 0.0
    %v1080 = vmax.f32 %v938, 0.0
    %v1081 = vmax.f32 %v940, 0.0
    %v1082 = vmax.f32 %v751, 0.0
    %v1083 = vmax.f32 %v753, 0.0
    %v1084 = vmax.f32 %v944, 0.0
    %v1085 = vmax.f32 %v946, 0.0
    %v1086 = vmax.f32 %v755, 0.0
    %v1087 = vmax.f32 %v757, 0.0
    %v1088 = vmax.f32 %v948, 0.0
    %v1089 = vmax.f32 %v950, 0.0
    %v1090 = vmax.f32 %v761, 0.0
    %v1091 = vmax.f32 %v763, 0.0
    %v1092 = vmax.f32 %v954, 0.0
    %v1093 = vmax.f32 %v956, 0.0
    %v1094 = vmax.f32 %v765, 0.0
    %v1095 = vmax.f32 %v767, 0.0
    %v1096 = vmax.f32 %v958, 0.0
    %v1097 = vmax.f32 %v960, 0.0
    %v1098 = vmax.f32 %v771, 0.0
    %v1099 = vmax.f32 %v773, 0.0
    %v1100 = vmax.f32 %v964, 0.0
    %v1101 = vmax.f32 %v966, 0.0
    %v1102 = vmax.f32 %v775, 0.0
    %v1103 = vmax.f32 %v777, 0.0
    %v1104 = vmax.f32 %v968, 0.0
    %v1105 = vmax.f32 %v970, 0.0
    %v1106 = vmax.f32 %v781, 0.0
    %v1107 = vmax.f32 %v783, 0.0
    %v1108 = vmax.f32 %v974, 0.0
    %v1109 = vmax.f32 %v976, 0.0
    %v1110 = vmax.f32 %v785, 0.0
    %v1111 = vmax.f32 %v787, 0.0
    %v1112 = vmax.f32 %v978, 0.0
    %v1113 = vmax.f32 %v980, 0.0
    %v1114 = vmax.f32 %v791, 0.0
    %v1115 = vmax.f32 %v793, 0.0
    %v1116 = vmax.f32 %v984, 0.0
    %v1117 = vmax.f32 %v986, 0.0
    %v1118 = vmax.f32 %v795, 0.0
    %v1119 = vmax.f32 %v797, 0.0
    %v1120 = vmax.f32 %v988, 0.0
    %v1121 = vmax.f32 %v990, 0.0
    %v1122 = vmax.f32 %v801, 0.0
    %v1123 = vmax.f32 %v803, 0.0
    %v1124 = vmax.f32 %v994, 0.0
    %v1125 = vmax.f32 %v996, 0.0
    %v1126 = vmax.f32 %v805, 0.0
    %v1127 = vmax.f32 %v807, 0.0
    %v1128 = vmax.f32 %v998, 0.0
    %v1129 = vmax.f32 %v1000, 0.0
    %v1130 = vpack.c.bf16 %v1006, %v1002
    %v1131 = vpack.c.bf16 %v1007, %v1003
    %v1132 = vpack.c.bf16 %v1008, %v1004
    %v1133 = vpack.c.bf16 %v1009, %v1005
    %v1134 = vpack.c.bf16 %v1014, %v1010
    %v1135 = vpack.c.bf16 %v1015, %v1011
    %v1136 = vpack.c.bf16 %v1016, %v1012
    %v1137 = vpack.c.bf16 %v1017, %v1013
    %v1138 = vpack.c.bf16 %v1022, %v1018
    %v1139 = vpack.c.bf16 %v1023, %v1019
    %v1140 = vpack.c.bf16 %v1024, %v1020
    %v1141 = vpack.c.bf16 %v1025, %v1021
    %v1142 = vpack.c.bf16 %v1030, %v1026
    %v1143 = vpack.c.bf16 %v1031, %v1027
    %v1144 = vpack.c.bf16 %v1032, %v1028
    %v1145 = vpack.c.bf16 %v1033, %v1029
    %v1146 = vpack.c.bf16 %v1038, %v1034
    %v1147 = vpack.c.bf16 %v1039, %v1035
    %v1148 = vpack.c.bf16 %v1040, %v1036
    %v1149 = vpack.c.bf16 %v1041, %v1037
    %v1150 = vpack.c.bf16 %v1046, %v1042
    %v1151 = vpack.c.bf16 %v1047, %v1043
    %v1152 = vpack.c.bf16 %v1048, %v1044
    %v1153 = vpack.c.bf16 %v1049, %v1045
    %v1154 = vpack.c.bf16 %v1054, %v1050
    %v1155 = vpack.c.bf16 %v1055, %v1051
    %v1156 = vpack.c.bf16 %v1056, %v1052
    %v1157 = vpack.c.bf16 %v1057, %v1053
    %v1158 = vpack.c.bf16 %v1062, %v1058
    %v1159 = vpack.c.bf16 %v1063, %v1059
    %v1160 = vpack.c.bf16 %v1064, %v1060
    %v1161 = vpack.c.bf16 %v1065, %v1061
    %v1162 = vpack.c.bf16 %v1070, %v1066
    %v1163 = vpack.c.bf16 %v1071, %v1067
    %v1164 = vpack.c.bf16 %v1072, %v1068
    %v1165 = vpack.c.bf16 %v1073, %v1069
    %v1166 = vpack.c.bf16 %v1078, %v1074
    %v1167 = vpack.c.bf16 %v1079, %v1075
    %v1168 = vpack.c.bf16 %v1080, %v1076
    %v1169 = vpack.c.bf16 %v1081, %v1077
    %v1170 = vpack.c.bf16 %v1086, %v1082
    %v1171 = vpack.c.bf16 %v1087, %v1083
    %v1172 = vpack.c.bf16 %v1088, %v1084
    %v1173 = vpack.c.bf16 %v1089, %v1085
    %v1174 = vpack.c.bf16 %v1094, %v1090
    %v1175 = vpack.c.bf16 %v1095, %v1091
    %v1176 = vpack.c.bf16 %v1096, %v1092
    %v1177 = vpack.c.bf16 %v1097, %v1093
    %v1178 = vpack.c.bf16 %v1102, %v1098
    %v1179 = vpack.c.bf16 %v1103, %v1099
    %v1180 = vpack.c.bf16 %v1104, %v1100
    %v1181 = vpack.c.bf16 %v1105, %v1101
    %v1182 = vpack.c.bf16 %v1110, %v1106
    %v1183 = vpack.c.bf16 %v1111, %v1107
    %v1184 = vpack.c.bf16 %v1112, %v1108
    %v1185 = vpack.c.bf16 %v1113, %v1109
    %v1186 = vpack.c.bf16 %v1118, %v1114
    %v1187 = vpack.c.bf16 %v1119, %v1115
    %v1188 = vpack.c.bf16 %v1120, %v1116
    %v1189 = vpack.c.bf16 %v1121, %v1117
    %v1190 = vpack.c.bf16 %v1126, %v1122
    %v1191 = vpack.c.bf16 %v1127, %v1123
    %v1192 = vpack.c.bf16 %v1128, %v1124
    %v1193 = vpack.c.bf16 %v1129, %v1125
    %v1194 = vld [vmem:[#allocation4] sm:$0xf]
    %v1195 = vld [vmem:[#allocation4 + $0x4] sm:$0xf]
    %v1196 = vld [vmem:[#allocation4 + $0x8] sm:$0xf]
    %v1197 = vld [vmem:[#allocation4 + $0xc] sm:$0xf]
    %v1198 = vld [vmem:[#allocation4 + $0x10] sm:$0xf]
    %v1199 = vld [vmem:[#allocation4 + $0x14] sm:$0xf]
    %v1200 = vld [vmem:[#allocation4 + $0x18] sm:$0xf]
    %v1201 = vld [vmem:[#allocation4 + $0x1c] sm:$0xf]
    %v1202 = vld [vmem:[#allocation4 + $0x20] sm:$0xf]
    %v1203 = vld [vmem:[#allocation4 + $0x24] sm:$0xf]
    %v1204 = vld [vmem:[#allocation4 + $0x28] sm:$0xf]
    %v1205 = vld [vmem:[#allocation4 + $0x2c] sm:$0xf]
    %v1206 = vld [vmem:[#allocation4 + $0x30] sm:$0xf]
    %v1207 = vld [vmem:[#allocation4 + $0x34] sm:$0xf]
    %v1208 = vld [vmem:[#allocation4 + $0x38] sm:$0xf]
    %v1209 = vld [vmem:[#allocation4 + $0x3c] sm:$0xf]
    %v1210 = vld [vmem:[#allocation4 + $0x40] sm:$0xf]
    %v1211 = vld [vmem:[#allocation4 + $0x44] sm:$0xf]
    %v1212 = vld [vmem:[#allocation4 + $0x48] sm:$0xf]
    %v1213 = vld [vmem:[#allocation4 + $0x4c] sm:$0xf]
    %v1214 = vld [vmem:[#allocation4 + $0x50] sm:$0xf]
    %v1215 = vld [vmem:[#allocation4 + $0x54] sm:$0xf]
    %v1216 = vld [vmem:[#allocation4 + $0x58] sm:$0xf]
    %v1217 = vld [vmem:[#allocation4 + $0x5c] sm:$0xf]
    %v1218 = vld [vmem:[#allocation4 + $0x60] sm:$0xf]
    %v1219 = vld [vmem:[#allocation4 + $0x64] sm:$0xf]
    %v1220 = vld [vmem:[#allocation4 + $0x68] sm:$0xf]
    %v1221 = vld [vmem:[#allocation4 + $0x6c] sm:$0xf]
    %v1222 = vld [vmem:[#allocation4 + $0x70] sm:$0xf]
    %v1223 = vld [vmem:[#allocation4 + $0x74] sm:$0xf]
    %v1224 = vld [vmem:[#allocation4 + $0x78] sm:$0xf]
    %v1225 = vld [vmem:[#allocation4 + $0x7c] sm:$0xf]
    %v1226 = vld [vmem:[#allocation4 + $0x80] sm:$0xf]
    %v1227 = vld [vmem:[#allocation4 + $0x84] sm:$0xf]
    %v1228 = vld [vmem:[#allocation4 + $0x88] sm:$0xf]
    %v1229 = vld [vmem:[#allocation4 + $0x8c] sm:$0xf]
    %v1230 = vld [vmem:[#allocation4 + $0x90] sm:$0xf]
    %v1231 = vld [vmem:[#allocation4 + $0x94] sm:$0xf]
    %v1232 = vld [vmem:[#allocation4 + $0x98] sm:$0xf]
    %v1233 = vld [vmem:[#allocation4 + $0x9c] sm:$0xf]
    %v1234 = vld [vmem:[#allocation4 + $0xa0] sm:$0xf]
    %v1235 = vld [vmem:[#allocation4 + $0xa4] sm:$0xf]
    %v1236 = vld [vmem:[#allocation4 + $0xa8] sm:$0xf]
    %v1237 = vld [vmem:[#allocation4 + $0xac] sm:$0xf]
    %v1238 = vld [vmem:[#allocation4 + $0xb0] sm:$0xf]
    %v1239 = vld [vmem:[#allocation4 + $0xb4] sm:$0xf]
    %v1240 = vld [vmem:[#allocation4 + $0xb8] sm:$0xf]
    %v1241 = vld [vmem:[#allocation4 + $0xbc] sm:$0xf]
    %v1242 = vld [vmem:[#allocation4 + $0xc0] sm:$0xf]
    %v1243 = vld [vmem:[#allocation4 + $0xc4] sm:$0xf]
    %v1244 = vld [vmem:[#allocation4 + $0xc8] sm:$0xf]
    %v1245 = vld [vmem:[#allocation4 + $0xcc] sm:$0xf]
    %v1246 = vld [vmem:[#allocation4 + $0xd0] sm:$0xf]
    %v1247 = vld [vmem:[#allocation4 + $0xd4] sm:$0xf]
    %v1248 = vld [vmem:[#allocation4 + $0xd8] sm:$0xf]
    %v1249 = vld [vmem:[#allocation4 + $0xdc] sm:$0xf]
    %v1250 = vld [vmem:[#allocation4 + $0xe0] sm:$0xf]
    %v1251 = vld [vmem:[#allocation4 + $0xe4] sm:$0xf]
    %v1252 = vld [vmem:[#allocation4 + $0xe8] sm:$0xf]
    %v1253 = vld [vmem:[#allocation4 + $0xec] sm:$0xf]
    %v1254 = vld [vmem:[#allocation4 + $0xf0] sm:$0xf]
    %v1255 = vld [vmem:[#allocation4 + $0xf4] sm:$0xf]
    %v1256 = vld [vmem:[#allocation4 + $0xf8] sm:$0xf]
    %v1257 = vld [vmem:[#allocation4 + $0xfc] sm:$0xf]
    %v1258 = vld [vmem:[%s6] sm:$0x1]
    %v1260 = vlaneseq
    %v1261 = vshrl.u32 %v1260, 7
    %v1262 = vsub.s32 0, %v1261
    %v1263 = vrot.slane %v1258, %v1262
    %v1329 = vunpack.c.l.b16 %v1194
    %v1330 = vunpack.c.l.b16 %v1195
    %v1331 = vunpack.c.l.b16 %v1196
    %v1332 = vunpack.c.l.b16 %v1197
    %v1333 = vunpack.c.l.b16 %v1198
    %v1334 = vunpack.c.l.b16 %v1199
    %v1335 = vunpack.c.l.b16 %v1200
    %v1336 = vunpack.c.l.b16 %v1201
    %v1337 = vunpack.c.l.b16 %v1202
    %v1338 = vunpack.c.l.b16 %v1203
    %v1339 = vunpack.c.l.b16 %v1204
    %v1340 = vunpack.c.l.b16 %v1205
    %v1341 = vunpack.c.l.b16 %v1206
    %v1342 = vunpack.c.l.b16 %v1207
    %v1343 = vunpack.c.l.b16 %v1208
    %v1344 = vunpack.c.l.b16 %v1209
    %v1345 = vunpack.c.l.b16 %v1210
    %v1346 = vunpack.c.l.b16 %v1211
    %v1347 = vunpack.c.l.b16 %v1212
    %v1348 = vunpack.c.l.b16 %v1213
    %v1349 = vunpack.c.l.b16 %v1214
    %v1350 = vunpack.c.l.b16 %v1215
    %v1351 = vunpack.c.l.b16 %v1216
    %v1352 = vunpack.c.l.b16 %v1217
    %v1353 = vunpack.c.l.b16 %v1218
    %v1354 = vunpack.c.l.b16 %v1219
    %v1355 = vunpack.c.l.b16 %v1220
    %v1356 = vunpack.c.l.b16 %v1221
    %v1357 = vunpack.c.l.b16 %v1222
    %v1358 = vunpack.c.l.b16 %v1223
    %v1359 = vunpack.c.l.b16 %v1224
    %v1360 = vunpack.c.l.b16 %v1225
    %v1361 = vunpack.c.l.b16 %v1226
    %v1362 = vunpack.c.l.b16 %v1227
    %v1363 = vunpack.c.l.b16 %v1228
    %v1364 = vunpack.c.l.b16 %v1229
    %v1365 = vunpack.c.l.b16 %v1230
    %v1366 = vunpack.c.l.b16 %v1231
    %v1367 = vunpack.c.l.b16 %v1232
    %v1368 = vunpack.c.l.b16 %v1233
    %v1369 = vunpack.c.l.b16 %v1234
    %v1370 = vunpack.c.l.b16 %v1235
    %v1371 = vunpack.c.l.b16 %v1236
    %v1372 = vunpack.c.l.b16 %v1237
    %v1373 = vunpack.c.l.b16 %v1238
    %v1374 = vunpack.c.l.b16 %v1239
    %v1375 = vunpack.c.l.b16 %v1240
    %v1376 = vunpack.c.l.b16 %v1241
    %v1377 = vunpack.c.l.b16 %v1242
    %v1378 = vunpack.c.l.b16 %v1243
    %v1379 = vunpack.c.l.b16 %v1244
    %v1380 = vunpack.c.l.b16 %v1245
    %v1381 = vunpack.c.l.b16 %v1246
    %v1382 = vunpack.c.l.b16 %v1247
    %v1383 = vunpack.c.l.b16 %v1248
    %v1384 = vunpack.c.l.b16 %v1249
    %v1385 = vunpack.c.l.b16 %v1250
    %v1386 = vunpack.c.l.b16 %v1251
    %v1387 = vunpack.c.l.b16 %v1252
    %v1388 = vunpack.c.l.b16 %v1253
    %v1389 = vunpack.c.l.b16 %v1254
    %v1390 = vunpack.c.l.b16 %v1255
    %v1391 = vunpack.c.l.b16 %v1256
    %v1392 = vunpack.c.l.b16 %v1257
    %v1393 = vpack.c.b16 %v1330, %v1329
    %v1394 = vpack.c.b16 %v1332, %v1331
    %v1395 = vpack.c.b16 %v1334, %v1333
    %v1396 = vpack.c.b16 %v1336, %v1335
    %v1397 = vpack.c.b16 %v1338, %v1337
    %v1398 = vpack.c.b16 %v1340, %v1339
    %v1399 = vpack.c.b16 %v1342, %v1341
    %v1400 = vpack.c.b16 %v1344, %v1343
    %v1401 = vpack.c.b16 %v1346, %v1345
    %v1402 = vpack.c.b16 %v1348, %v1347
    %v1403 = vpack.c.b16 %v1350, %v1349
    %v1404 = vpack.c.b16 %v1352, %v1351
    %v1405 = vpack.c.b16 %v1354, %v1353
    %v1406 = vpack.c.b16 %v1356, %v1355
    %v1407 = vpack.c.b16 %v1358, %v1357
    %v1408 = vpack.c.b16 %v1360, %v1359
    %v1409 = vpack.c.b16 %v1362, %v1361
    %v1410 = vpack.c.b16 %v1364, %v1363
    %v1411 = vpack.c.b16 %v1366, %v1365
    %v1412 = vpack.c.b16 %v1368, %v1367
    %v1413 = vpack.c.b16 %v1370, %v1369
    %v1414 = vpack.c.b16 %v1372, %v1371
    %v1415 = vpack.c.b16 %v1374, %v1373
    %v1416 = vpack.c.b16 %v1376, %v1375
    %v1417 = vpack.c.b16 %v1378, %v1377
    %v1418 = vpack.c.b16 %v1380, %v1379
    %v1419 = vpack.c.b16 %v1382, %v1381
    %v1420 = vpack.c.b16 %v1384, %v1383
    %v1421 = vpack.c.b16 %v1386, %v1385
    %v1422 = vpack.c.b16 %v1388, %v1387
    %v1423 = vpack.c.b16 %v1390, %v1389
    %v1424 = vpack.c.b16 %v1392, %v1391
    %1457 = vmatprep.subr.bf16.mxu0 0
    %1458 = vmatpush1.bf16.msra.mxu0 %v1393
    %1459 = vmatprep.subr.bf16.mxu0 0
    %1460 = vmatpush1.bf16.msra.mxu0 %v1394
    %1461 = vmatprep.subr.bf16.mxu0 0
    %1462 = vmatpush1.bf16.msra.mxu0 %v1395
    %1463 = vmatprep.subr.bf16.mxu0 0
    %1464 = vmatpush1.bf16.msra.mxu0 %v1396
    %1465 = vmatprep.subr.bf16.mxu0 0
    %1466 = vmatpush1.bf16.msra.mxu0 %v1397
    %1467 = vmatprep.subr.bf16.mxu0 0
    %1468 = vmatpush1.bf16.msra.mxu0 %v1398
    %1469 = vmatprep.subr.bf16.mxu0 0
    %1470 = vmatpush1.bf16.msra.mxu0 %v1399
    %1471 = vmatprep.subr.bf16.mxu0 0
    %1472 = vmatpush1.bf16.msra.mxu0 %v1400
    %1473 = vmatprep.subr.bf16.mxu0 0
    %1474 = vmatpush1.bf16.msra.mxu0 %v1401
    %1475 = vmatprep.subr.bf16.mxu0 0
    %1476 = vmatpush1.bf16.msra.mxu0 %v1402
    %1477 = vmatprep.subr.bf16.mxu0 0
    %1478 = vmatpush1.bf16.msra.mxu0 %v1403
    %1479 = vmatprep.subr.bf16.mxu0 0
    %1480 = vmatpush1.bf16.msra.mxu0 %v1404
    %1481 = vmatprep.subr.bf16.mxu0 0
    %1482 = vmatpush1.bf16.msra.mxu0 %v1405
    %1483 = vmatprep.subr.bf16.mxu0 0
    %1484 = vmatpush1.bf16.msra.mxu0 %v1406
    %1485 = vmatprep.subr.bf16.mxu0 0
    %1486 = vmatpush1.bf16.msra.mxu0 %v1407
    %1487 = vmatprep.subr.bf16.mxu0 0
    %1488 = vmatpush1.bf16.msra.mxu0 %v1408
    %1489 = vmatprep.mubr.bf16.mxu0 %v1131
    %1490 = vmatmul.mubr.bf16.gmra.mrb[0].mxu0 %v1130
    %v1491 = vpop.f32.mrb[0].mxu0
    %v1492 = vadd.f32 %v1263, %v1491
    %v1493 = vpop.f32.mrb[0].mxu0
    %v1494 = vpop.f32.mrb[0].mxu0
    %v1495 = vadd.f32 %v1263, %v1494
    %v1496 = vpop.f32.mrb[0].mxu0
    %1497 = vmatprep.mubr.bf16.mxu0 %v1135
    %1498 = vmatmul.mubr.bf16.gmra.mrb[0].mxu0 %v1134
    %v1499 = vpop.f32.mrb[0].mxu0
    %v1500 = vadd.f32 %v1263, %v1499
    %v1501 = vpop.f32.mrb[0].mxu0
    %v1502 = vpop.f32.mrb[0].mxu0
    %v1503 = vadd.f32 %v1263, %v1502
    %v1504 = vpop.f32.mrb[0].mxu0
    %1505 = vmatprep.mubr.bf16.mxu0 %v1139
    %1506 = vmatmul.mubr.bf16.gmra.mrb[0].mxu0 %v1138
    %v1507 = vpop.f32.mrb[0].mxu0
    %v1508 = vadd.f32 %v1263, %v1507
    %v1509 = vpop.f32.mrb[0].mxu0
    %v1510 = vpop.f32.mrb[0].mxu0
    %v1511 = vadd.f32 %v1263, %v1510
    %v1512 = vpop.f32.mrb[0].mxu0
    %1513 = vmatprep.mubr.bf16.mxu0 %v1143
    %1514 = vmatmul.mubr.bf16.gmra.mrb[0].mxu0 %v1142
    %v1515 = vpop.f32.mrb[0].mxu0
    %v1516 = vadd.f32 %v1263, %v1515
    %v1517 = vpop.f32.mrb[0].mxu0
    %v1518 = vpop.f32.mrb[0].mxu0
    %v1519 = vadd.f32 %v1263, %v1518
    %v1520 = vpop.f32.mrb[0].mxu0
    %1521 = vmatprep.mubr.bf16.mxu0 %v1147
    %1522 = vmatmul.mubr.bf16.gmra.mrb[0].mxu0 %v1146
    %v1523 = vpop.f32.mrb[0].mxu0
    %v1524 = vadd.f32 %v1263, %v1523
    %v1525 = vpop.f32.mrb[0].mxu0
    %v1526 = vpop.f32.mrb[0].mxu0
    %v1527 = vadd.f32 %v1263, %v1526
    %v1528 = vpop.f32.mrb[0].mxu0
    %1529 = vmatprep.mubr.bf16.mxu0 %v1151
    %1530 = vmatmul.mubr.bf16.gmra.mrb[0].mxu0 %v1150
    %v1531 = vpop.f32.mrb[0].mxu0
    %v1532 = vadd.f32 %v1263, %v1531
    %v1533 = vpop.f32.mrb[0].mxu0
    %v1534 = vpop.f32.mrb[0].mxu0
    %v1535 = vadd.f32 %v1263, %v1534
    %v1536 = vpop.f32.mrb[0].mxu0
    %1537 = vmatprep.mubr.bf16.mxu0 %v1155
    %1538 = vmatmul.mubr.bf16.gmra.mrb[0].mxu0 %v1154
    %v1539 = vpop.f32.mrb[0].mxu0
    %v1540 = vadd.f32 %v1263, %v1539
    %v1541 = vpop.f32.mrb[0].mxu0
    %v1542 = vpop.f32.mrb[0].mxu0
    %v1543 = vadd.f32 %v1263, %v1542
    %v1544 = vpop.f32.mrb[0].mxu0
    %1545 = vmatprep.mubr.bf16.mxu0 %v1159
    %1546 = vmatmul.mubr.bf16.gmra.mrb[0].mxu0 %v1158
    %v1547 = vpop.f32.mrb[0].mxu0
    %v1548 = vadd.f32 %v1263, %v1547
    %v1549 = vpop.f32.mrb[0].mxu0
    %v1550 = vpop.f32.mrb[0].mxu0
    %v1551 = vadd.f32 %v1263, %v1550
    %v1552 = vpop.f32.mrb[0].mxu0
    %1553 = vmatprep.mubr.bf16.mxu0 %v1163
    %1554 = vmatmul.mubr.bf16.gmra.mrb[0].mxu0 %v1162
    %v1555 = vpop.f32.mrb[0].mxu0
    %v1556 = vadd.f32 %v1263, %v1555
    %v1557 = vpop.f32.mrb[0].mxu0
    %v1558 = vpop.f32.mrb[0].mxu0
    %v1559 = vadd.f32 %v1263, %v1558
    %v1560 = vpop.f32.mrb[0].mxu0
    %1561 = vmatprep.mubr.bf16.mxu0 %v1167
    %1562 = vmatmul.mubr.bf16.gmra.mrb[0].mxu0 %v1166
    %v1563 = vpop.f32.mrb[0].mxu0
    %v1564 = vadd.f32 %v1263, %v1563
    %v1565 = vpop.f32.mrb[0].mxu0
    %v1566 = vpop.f32.mrb[0].mxu0
    %v1567 = vadd.f32 %v1263, %v1566
    %v1568 = vpop.f32.mrb[0].mxu0
    %1569 = vmatprep.mubr.bf16.mxu0 %v1171
    %1570 = vmatmul.mubr.bf16.gmra.mrb[0].mxu0 %v1170
    %v1571 = vpop.f32.mrb[0].mxu0
    %v1572 = vadd.f32 %v1263, %v1571
    %v1573 = vpop.f32.mrb[0].mxu0
    %v1574 = vpop.f32.mrb[0].mxu0
    %v1575 = vadd.f32 %v1263, %v1574
    %v1576 = vpop.f32.mrb[0].mxu0
    %1577 = vmatprep.mubr.bf16.mxu0 %v1175
    %1578 = vmatmul.mubr.bf16.gmra.mrb[0].mxu0 %v1174
    %v1579 = vpop.f32.mrb[0].mxu0
    %v1580 = vadd.f32 %v1263, %v1579
    %v1581 = vpop.f32.mrb[0].mxu0
    %v1582 = vpop.f32.mrb[0].mxu0
    %v1583 = vadd.f32 %v1263, %v1582
    %v1584 = vpop.f32.mrb[0].mxu0
    %1585 = vmatprep.mubr.bf16.mxu0 %v1179
    %1586 = vmatmul.mubr.bf16.gmra.mrb[0].mxu0 %v1178
    %v1587 = vpop.f32.mrb[0].mxu0
    %v1588 = vadd.f32 %v1263, %v1587
    %v1589 = vpop.f32.mrb[0].mxu0
    %v1590 = vpop.f32.mrb[0].mxu0
    %v1591 = vadd.f32 %v1263, %v1590
    %v1592 = vpop.f32.mrb[0].mxu0
    %1593 = vmatprep.mubr.bf16.mxu0 %v1183
    %1594 = vmatmul.mubr.bf16.gmra.mrb[0].mxu0 %v1182
    %v1595 = vpop.f32.mrb[0].mxu0
    %v1596 = vadd.f32 %v1263, %v1595
    %v1597 = vpop.f32.mrb[0].mxu0
    %v1598 = vpop.f32.mrb[0].mxu0
    %v1599 = vadd.f32 %v1263, %v1598
    %v1600 = vpop.f32.mrb[0].mxu0
    %1601 = vmatprep.mubr.bf16.mxu0 %v1187
    %1602 = vmatmul.mubr.bf16.gmra.mrb[0].mxu0 %v1186
    %v1603 = vpop.f32.mrb[0].mxu0
    %v1604 = vadd.f32 %v1263, %v1603
    %v1605 = vpop.f32.mrb[0].mxu0
    %v1606 = vpop.f32.mrb[0].mxu0
    %v1607 = vadd.f32 %v1263, %v1606
    %v1608 = vpop.f32.mrb[0].mxu0
    %1609 = vmatprep.mubr.bf16.mxu0 %v1191
    %1610 = vmatmul.mubr.bf16.gmra.mrb[0].mxu0 %v1190
    %v1611 = vpop.f32.mrb[0].mxu0
    %v1612 = vadd.f32 %v1263, %v1611
    %v1613 = vpop.f32.mrb[0].mxu0
    %v1614 = vpop.f32.mrb[0].mxu0
    %v1615 = vadd.f32 %v1263, %v1614
    %v1616 = vpop.f32.mrb[0].mxu0
    %1617 = vdwg.mxu0
    %1618 = vmatprep.subr.bf16.mxu0 0
    %1619 = vmatpush1.bf16.msra.mxu0 %v1409
    %1620 = vmatprep.subr.bf16.mxu0 0
    %1621 = vmatpush1.bf16.msra.mxu0 %v1410
    %1622 = vmatprep.subr.bf16.mxu0 0
    %1623 = vmatpush1.bf16.msra.mxu0 %v1411
    %1624 = vmatprep.subr.bf16.mxu0 0
    %1625 = vmatpush1.bf16.msra.mxu0 %v1412
    %1626 = vmatprep.subr.bf16.mxu0 0
    %1627 = vmatpush1.bf16.msra.mxu0 %v1413
    %1628 = vmatprep.subr.bf16.mxu0 0
    %1629 = vmatpush1.bf16.msra.mxu0 %v1414
    %1630 = vmatprep.subr.bf16.mxu0 0
    %1631 = vmatpush1.bf16.msra.mxu0 %v1415
    %1632 = vmatprep.subr.bf16.mxu0 0
    %1633 = vmatpush1.bf16.msra.mxu0 %v1416
    %1634 = vmatprep.subr.bf16.mxu0 0
    %1635 = vmatpush1.bf16.msra.mxu0 %v1417
    %1636 = vmatprep.subr.bf16.mxu0 0
    %1637 = vmatpush1.bf16.msra.mxu0 %v1418
    %1638 = vmatprep.subr.bf16.mxu0 0
    %1639 = vmatpush1.bf16.msra.mxu0 %v1419
    %1640 = vmatprep.subr.bf16.mxu0 0
    %1641 = vmatpush1.bf16.msra.mxu0 %v1420
    %1642 = vmatprep.subr.bf16.mxu0 0
    %1643 = vmatpush1.bf16.msra.mxu0 %v1421
    %1644 = vmatprep.subr.bf16.mxu0 0
    %1645 = vmatpush1.bf16.msra.mxu0 %v1422
    %1646 = vmatprep.subr.bf16.mxu0 0
    %1647 = vmatpush1.bf16.msra.mxu0 %v1423
    %1648 = vmatprep.subr.bf16.mxu0 0
    %1649 = vmatpush1.bf16.msra.mxu0 %v1424
    %1650 = vmatprep.mubr.bf16.mxu0 %v1133
    %1651 = vmatmul.mubr.bf16.gmra.mrb[0].mxu0 %v1132
    %v1652 = vpop.f32.mrb[0].mxu0
    %v1653 = vadd.f32 %v1492, %v1652
    %v1654 = vpop.f32.mrb[0].mxu0
    %v1655 = vpop.f32.mrb[0].mxu0
    %v1656 = vadd.f32 %v1495, %v1655
    %v1657 = vpop.f32.mrb[0].mxu0
    %1658 = vmatprep.mubr.bf16.mxu0 %v1137
    %1659 = vmatmul.mubr.bf16.gmra.mrb[0].mxu0 %v1136
    %v1660 = vpop.f32.mrb[0].mxu0
    %v1661 = vadd.f32 %v1500, %v1660
    %v1662 = vpop.f32.mrb[0].mxu0
    %v1663 = vpop.f32.mrb[0].mxu0
    %v1664 = vadd.f32 %v1503, %v1663
    %v1665 = vpop.f32.mrb[0].mxu0
    %1666 = vmatprep.mubr.bf16.mxu0 %v1141
    %1667 = vmatmul.mubr.bf16.gmra.mrb[0].mxu0 %v1140
    %v1668 = vpop.f32.mrb[0].mxu0
    %v1669 = vadd.f32 %v1508, %v1668
    %v1670 = vpop.f32.mrb[0].mxu0
    %v1671 = vpop.f32.mrb[0].mxu0
    %v1672 = vadd.f32 %v1511, %v1671
    %v1673 = vpop.f32.mrb[0].mxu0
    %1674 = vmatprep.mubr.bf16.mxu0 %v1145
    %1675 = vmatmul.mubr.bf16.gmra.mrb[0].mxu0 %v1144
    %v1676 = vpop.f32.mrb[0].mxu0
    %v1677 = vadd.f32 %v1516, %v1676
    %v1678 = vpop.f32.mrb[0].mxu0
    %v1679 = vpop.f32.mrb[0].mxu0
    %v1680 = vadd.f32 %v1519, %v1679
    %v1681 = vpop.f32.mrb[0].mxu0
    %1682 = vmatprep.mubr.bf16.mxu0 %v1149
    %1683 = vmatmul.mubr.bf16.gmra.mrb[0].mxu0 %v1148
    %v1684 = vpop.f32.mrb[0].mxu0
    %v1685 = vadd.f32 %v1524, %v1684
    %v1686 = vpop.f32.mrb[0].mxu0
    %v1687 = vpop.f32.mrb[0].mxu0
    %v1688 = vadd.f32 %v1527, %v1687
    %v1689 = vpop.f32.mrb[0].mxu0
    %1690 = vmatprep.mubr.bf16.mxu0 %v1153
    %1691 = vmatmul.mubr.bf16.gmra.mrb[0].mxu0 %v1152
    %v1692 = vpop.f32.mrb[0].mxu0
    %v1693 = vadd.f32 %v1532, %v1692
    %v1694 = vpop.f32.mrb[0].mxu0
    %v1695 = vpop.f32.mrb[0].mxu0
    %v1696 = vadd.f32 %v1535, %v1695
    %v1697 = vpop.f32.mrb[0].mxu0
    %1698 = vmatprep.mubr.bf16.mxu0 %v1157
    %1699 = vmatmul.mubr.bf16.gmra.mrb[0].mxu0 %v1156
    %v1700 = vpop.f32.mrb[0].mxu0
    %v1701 = vadd.f32 %v1540, %v1700
    %v1702 = vpop.f32.mrb[0].mxu0
    %v1703 = vpop.f32.mrb[0].mxu0
    %v1704 = vadd.f32 %v1543, %v1703
    %v1705 = vpop.f32.mrb[0].mxu0
    %1706 = vmatprep.mubr.bf16.mxu0 %v1161
    %1707 = vmatmul.mubr.bf16.gmra.mrb[0].mxu0 %v1160
    %v1708 = vpop.f32.mrb[0].mxu0
    %v1709 = vadd.f32 %v1548, %v1708
    %v1710 = vpop.f32.mrb[0].mxu0
    %v1711 = vpop.f32.mrb[0].mxu0
    %v1712 = vadd.f32 %v1551, %v1711
    %v1713 = vpop.f32.mrb[0].mxu0
    %1714 = vmatprep.mubr.bf16.mxu0 %v1165
    %1715 = vmatmul.mubr.bf16.gmra.mrb[0].mxu0 %v1164
    %v1716 = vpop.f32.mrb[0].mxu0
    %v1717 = vadd.f32 %v1556, %v1716
    %v1718 = vpop.f32.mrb[0].mxu0
    %v1719 = vpop.f32.mrb[0].mxu0
    %v1720 = vadd.f32 %v1559, %v1719
    %v1721 = vpop.f32.mrb[0].mxu0
    %1722 = vmatprep.mubr.bf16.mxu0 %v1169
    %1723 = vmatmul.mubr.bf16.gmra.mrb[0].mxu0 %v1168
    %v1724 = vpop.f32.mrb[0].mxu0
    %v1725 = vadd.f32 %v1564, %v1724
    %v1726 = vpop.f32.mrb[0].mxu0
    %v1727 = vpop.f32.mrb[0].mxu0
    %v1728 = vadd.f32 %v1567, %v1727
    %v1729 = vpop.f32.mrb[0].mxu0
    %1730 = vmatprep.mubr.bf16.mxu0 %v1173
    %1731 = vmatmul.mubr.bf16.gmra.mrb[0].mxu0 %v1172
    %v1732 = vpop.f32.mrb[0].mxu0
    %v1733 = vadd.f32 %v1572, %v1732
    %v1734 = vpop.f32.mrb[0].mxu0
    %v1735 = vpop.f32.mrb[0].mxu0
    %v1736 = vadd.f32 %v1575, %v1735
    %v1737 = vpop.f32.mrb[0].mxu0
    %1738 = vmatprep.mubr.bf16.mxu0 %v1177
    %1739 = vmatmul.mubr.bf16.gmra.mrb[0].mxu0 %v1176
    %v1740 = vpop.f32.mrb[0].mxu0
    %v1741 = vadd.f32 %v1580, %v1740
    %v1742 = vpop.f32.mrb[0].mxu0
    %v1743 = vpop.f32.mrb[0].mxu0
    %v1744 = vadd.f32 %v1583, %v1743
    %v1745 = vpop.f32.mrb[0].mxu0
    %1746 = vmatprep.mubr.bf16.mxu0 %v1181
    %1747 = vmatmul.mubr.bf16.gmra.mrb[0].mxu0 %v1180
    %v1748 = vpop.f32.mrb[0].mxu0
    %v1749 = vadd.f32 %v1588, %v1748
    %v1750 = vpop.f32.mrb[0].mxu0
    %v1751 = vpop.f32.mrb[0].mxu0
    %v1752 = vadd.f32 %v1591, %v1751
    %v1753 = vpop.f32.mrb[0].mxu0
    %1754 = vmatprep.mubr.bf16.mxu0 %v1185
    %1755 = vmatmul.mubr.bf16.gmra.mrb[0].mxu0 %v1184
    %v1756 = vpop.f32.mrb[0].mxu0
    %v1757 = vadd.f32 %v1596, %v1756
    %v1758 = vpop.f32.mrb[0].mxu0
    %v1759 = vpop.f32.mrb[0].mxu0
    %v1760 = vadd.f32 %v1599, %v1759
    %v1761 = vpop.f32.mrb[0].mxu0
    %1762 = vmatprep.mubr.bf16.mxu0 %v1189
    %1763 = vmatmul.mubr.bf16.gmra.mrb[0].mxu0 %v1188
    %v1764 = vpop.f32.mrb[0].mxu0
    %v1765 = vadd.f32 %v1604, %v1764
    %v1766 = vpop.f32.mrb[0].mxu0
    %v1767 = vpop.f32.mrb[0].mxu0
    %v1768 = vadd.f32 %v1607, %v1767
    %v1769 = vpop.f32.mrb[0].mxu0
    %1770 = vmatprep.mubr.bf16.mxu0 %v1193
    %1771 = vmatmul.mubr.bf16.gmra.mrb[0].mxu0 %v1192
    %v1772 = vpop.f32.mrb[0].mxu0
    %v1773 = vadd.f32 %v1612, %v1772
    %v1774 = vpop.f32.mrb[0].mxu0
    %v1775 = vpop.f32.mrb[0].mxu0
    %v1776 = vadd.f32 %v1615, %v1775
    %v1777 = vpop.f32.mrb[0].mxu0
    %1778 = vdwg.mxu0
    %v1779 = vmax.f32 %v1653, 0.0
    %v1780 = vmax.f32 %v1656, 0.0
    %v1781 = vmax.f32 %v1661, 0.0
    %v1782 = vmax.f32 %v1664, 0.0
    %v1783 = vmax.f32 %v1669, 0.0
    %v1784 = vmax.f32 %v1672, 0.0
    %v1785 = vmax.f32 %v1677, 0.0
    %v1786 = vmax.f32 %v1680, 0.0
    %v1787 = vmax.f32 %v1685, 0.0
    %v1788 = vmax.f32 %v1688, 0.0
    %v1789 = vmax.f32 %v1693, 0.0
    %v1790 = vmax.f32 %v1696, 0.0
    %v1791 = vmax.f32 %v1701, 0.0
    %v1792 = vmax.f32 %v1704, 0.0
    %v1793 = vmax.f32 %v1709, 0.0
    %v1794 = vmax.f32 %v1712, 0.0
    %v1795 = vmax.f32 %v1717, 0.0
    %v1796 = vmax.f32 %v1720, 0.0
    %v1797 = vmax.f32 %v1725, 0.0
    %v1798 = vmax.f32 %v1728, 0.0
    %v1799 = vmax.f32 %v1733, 0.0
    %v1800 = vmax.f32 %v1736, 0.0
    %v1801 = vmax.f32 %v1741, 0.0
    %v1802 = vmax.f32 %v1744, 0.0
    %v1803 = vmax.f32 %v1749, 0.0
    %v1804 = vmax.f32 %v1752, 0.0
    %v1805 = vmax.f32 %v1757, 0.0
    %v1806 = vmax.f32 %v1760, 0.0
    %v1807 = vmax.f32 %v1765, 0.0
    %v1808 = vmax.f32 %v1768, 0.0
    %v1809 = vmax.f32 %v1773, 0.0
    %v1810 = vmax.f32 %v1776, 0.0
    %v1811 = vpack.c.bf16 %v1780, %v1779
    %v1812 = vpack.c.bf16 %v1782, %v1781
    %v1813 = vpack.c.bf16 %v1784, %v1783
    %v1814 = vpack.c.bf16 %v1786, %v1785
    %v1815 = vpack.c.bf16 %v1788, %v1787
    %v1816 = vpack.c.bf16 %v1790, %v1789
    %v1817 = vpack.c.bf16 %v1792, %v1791
    %v1818 = vpack.c.bf16 %v1794, %v1793
    %v1819 = vpack.c.bf16 %v1796, %v1795
    %v1820 = vpack.c.bf16 %v1798, %v1797
    %v1821 = vpack.c.bf16 %v1800, %v1799
    %v1822 = vpack.c.bf16 %v1802, %v1801
    %v1823 = vpack.c.bf16 %v1804, %v1803
    %v1824 = vpack.c.bf16 %v1806, %v1805
    %v1825 = vpack.c.bf16 %v1808, %v1807
    %v1826 = vpack.c.bf16 %v1810, %v1809
    %v1827 = vld [vmem:[#allocation6] sm:$0xf]
    %v1828 = vld [vmem:[#allocation6 + $0x4] sm:$0xf]
    %v1829 = vld [vmem:[#allocation6 + $0x8] sm:$0xf]
    %v1830 = vld [vmem:[#allocation6 + $0xc] sm:$0xf]
    %v1831 = vld [vmem:[#allocation6 + $0x10] sm:$0xf]
    %v1832 = vld [vmem:[#allocation6 + $0x14] sm:$0xf]
    %v1833 = vld [vmem:[#allocation6 + $0x18] sm:$0xf]
    %v1834 = vld [vmem:[#allocation6 + $0x1c] sm:$0xf]
    %v1835 = vld [vmem:[#allocation6 + $0x20] sm:$0xf]
    %v1836 = vld [vmem:[#allocation6 + $0x24] sm:$0xf]
    %v1837 = vld [vmem:[#allocation6 + $0x28] sm:$0xf]
    %v1838 = vld [vmem:[#allocation6 + $0x2c] sm:$0xf]
    %v1839 = vld [vmem:[#allocation6 + $0x30] sm:$0xf]
    %v1840 = vld [vmem:[#allocation6 + $0x34] sm:$0xf]
    %v1841 = vld [vmem:[#allocation6 + $0x38] sm:$0xf]
    %v1842 = vld [vmem:[#allocation6 + $0x3c] sm:$0xf]
    %v1843 = vld [vmem:[%s8] sm:$0x1]
    %v1845 = vlaneseq
    %v1846 = vshrl.u32 %v1845, 7
    %v1847 = vsub.s32 0, %v1846
    %v1848 = vrot.slane %v1843, %v1847
    %v1866 = vunpack.c.l.b16 %v1827
    %v1867 = vunpack.c.l.b16 %v1828
    %v1868 = vunpack.c.l.b16 %v1829
    %v1869 = vunpack.c.l.b16 %v1830
    %v1870 = vunpack.c.l.b16 %v1831
    %v1871 = vunpack.c.l.b16 %v1832
    %v1872 = vunpack.c.l.b16 %v1833
    %v1873 = vunpack.c.l.b16 %v1834
    %v1874 = vunpack.c.l.b16 %v1835
    %v1875 = vunpack.c.l.b16 %v1836
    %v1876 = vunpack.c.l.b16 %v1837
    %v1877 = vunpack.c.l.b16 %v1838
    %v1878 = vunpack.c.l.b16 %v1839
    %v1879 = vunpack.c.l.b16 %v1840
    %v1880 = vunpack.c.l.b16 %v1841
    %v1881 = vunpack.c.l.b16 %v1842
    %v1882 = vpack.c.b16 %v1867, %v1866
    %v1883 = vpack.c.b16 %v1869, %v1868
    %v1884 = vpack.c.b16 %v1871, %v1870
    %v1885 = vpack.c.b16 %v1873, %v1872
    %v1886 = vpack.c.b16 %v1875, %v1874
    %v1887 = vpack.c.b16 %v1877, %v1876
    %v1888 = vpack.c.b16 %v1879, %v1878
    %v1889 = vpack.c.b16 %v1881, %v1880
    %1898 = vmatprep.subr.bf16.mxu0 0
    %1899 = vmatpush1.bf16.msra.mxu0 %v1882
    %1900 = vmatprep.subr.bf16.mxu0 0
    %1901 = vmatpush1.bf16.msra.mxu0 %v1883
    %1902 = vmatprep.subr.bf16.mxu0 0
    %1903 = vmatpush1.bf16.msra.mxu0 %v1884
    %1904 = vmatprep.subr.bf16.mxu0 0
    %1905 = vmatpush1.bf16.msra.mxu0 %v1885
    %1906 = vmatprep.subr.bf16.mxu0 0
    %1907 = vmatpush1.bf16.msra.mxu0 %v1886
    %1908 = vmatprep.subr.bf16.mxu0 0
    %1909 = vmatpush1.bf16.msra.mxu0 %v1887
    %1910 = vmatprep.subr.bf16.mxu0 0
    %1911 = vmatpush1.bf16.msra.mxu0 %v1888
    %1912 = vmatprep.subr.bf16.mxu0 0
    %1913 = vmatpush1.bf16.msra.mxu0 %v1889
    %1914 = vmatprep.subr.bf16.mxu0 0
    %1915 = vmatpush1.bf16.msra.mxu0 0
    %1916 = vmatprep.subr.bf16.mxu0 0
    %1917 = vmatpush1.bf16.msra.mxu0 0
    %1918 = vmatprep.subr.bf16.mxu0 0
    %1919 = vmatpush1.bf16.msra.mxu0 0
    %1920 = vmatprep.subr.bf16.mxu0 0
    %1921 = vmatpush1.bf16.msra.mxu0 0
    %1922 = vmatprep.subr.bf16.mxu0 0
    %1923 = vmatpush1.bf16.msra.mxu0 0
    %1924 = vmatprep.subr.bf16.mxu0 0
    %1925 = vmatpush1.bf16.msra.mxu0 0
    %1926 = vmatprep.subr.bf16.mxu0 0
    %1927 = vmatpush1.bf16.msra.mxu0 0
    %1928 = vmatprep.subr.bf16.mxu0 0
    %1929 = vmatpush1.bf16.msra.mxu0 0
    %1930 = vmatprep.mubr.bf16.mxu0 0
    %1931 = vmatmul.mubr.bf16.gmra.mrb[0].mxu0 %v1811
    %v1932 = vpop.f32.mrb[0].mxu0
    %v1933 = vadd.f32 %v1848, %v1932
    %v1934 = vpop.f32.mrb[0].mxu0
    %v1935 = vpop.f32.mrb[0].mxu0
    %v1936 = vadd.f32 %v1848, %v1935
    %v1937 = vpop.f32.mrb[0].mxu0
    %1938 = vmatprep.mubr.bf16.mxu0 0
    %1939 = vmatmul.mubr.bf16.gmra.mrb[0].mxu0 %v1812
    %v1940 = vpop.f32.mrb[0].mxu0
    %v1941 = vadd.f32 %v1848, %v1940
    %v1942 = vpop.f32.mrb[0].mxu0
    %v1943 = vpop.f32.mrb[0].mxu0
    %v1944 = vadd.f32 %v1848, %v1943
    %v1945 = vpop.f32.mrb[0].mxu0
    %1946 = vmatprep.mubr.bf16.mxu0 0
    %1947 = vmatmul.mubr.bf16.gmra.mrb[0].mxu0 %v1813
    %v1948 = vpop.f32.mrb[0].mxu0
    %v1949 = vadd.f32 %v1848, %v1948
    %v1950 = vpop.f32.mrb[0].mxu0
    %v1951 = vpop.f32.mrb[0].mxu0
    %v1952 = vadd.f32 %v1848, %v1951
    %v1953 = vpop.f32.mrb[0].mxu0
    %1954 = vmatprep.mubr.bf16.mxu0 0
    %1955 = vmatmul.mubr.bf16.gmra.mrb[0].mxu0 %v1814
    %v1956 = vpop.f32.mrb[0].mxu0
    %v1957 = vadd.f32 %v1848, %v1956
    %v1958 = vpop.f32.mrb[0].mxu0
    %v1959 = vpop.f32.mrb[0].mxu0
    %v1960 = vadd.f32 %v1848, %v1959
    %v1961 = vpop.f32.mrb[0].mxu0
    %1962 = vmatprep.mubr.bf16.mxu0 0
    %1963 = vmatmul.mubr.bf16.gmra.mrb[0].mxu0 %v1815
    %v1964 = vpop.f32.mrb[0].mxu0
    %v1965 = vadd.f32 %v1848, %v1964
    %v1966 = vpop.f32.mrb[0].mxu0
    %v1967 = vpop.f32.mrb[0].mxu0
    %v1968 = vadd.f32 %v1848, %v1967
    %v1969 = vpop.f32.mrb[0].mxu0
    %1970 = vmatprep.mubr.bf16.mxu0 0
    %1971 = vmatmul.mubr.bf16.gmra.mrb[0].mxu0 %v1816
    %v1972 = vpop.f32.mrb[0].mxu0
    %v1973 = vadd.f32 %v1848, %v1972
    %v1974 = vpop.f32.mrb[0].mxu0
    %v1975 = vpop.f32.mrb[0].mxu0
    %v1976 = vadd.f32 %v1848, %v1975
    %v1977 = vpop.f32.mrb[0].mxu0
    %1978 = vmatprep.mubr.bf16.mxu0 0
    %1979 = vmatmul.mubr.bf16.gmra.mrb[0].mxu0 %v1817
    %v1980 = vpop.f32.mrb[0].mxu0
    %v1981 = vadd.f32 %v1848, %v1980
    %v1982 = vpop.f32.mrb[0].mxu0
    %v1983 = vpop.f32.mrb[0].mxu0
    %v1984 = vadd.f32 %v1848, %v1983
    %v1985 = vpop.f32.mrb[0].mxu0
    %1986 = vmatprep.mubr.bf16.mxu0 0
    %1987 = vmatmul.mubr.bf16.gmra.mrb[0].mxu0 %v1818
    %v1988 = vpop.f32.mrb[0].mxu0
    %v1989 = vadd.f32 %v1848, %v1988
    %v1990 = vpop.f32.mrb[0].mxu0
    %v1991 = vpop.f32.mrb[0].mxu0
    %v1992 = vadd.f32 %v1848, %v1991
    %v1993 = vpop.f32.mrb[0].mxu0
    %1994 = vmatprep.mubr.bf16.mxu0 0
    %1995 = vmatmul.mubr.bf16.gmra.mrb[0].mxu0 %v1819
    %v1996 = vpop.f32.mrb[0].mxu0
    %v1997 = vadd.f32 %v1848, %v1996
    %v1998 = vpop.f32.mrb[0].mxu0
    %v1999 = vpop.f32.mrb[0].mxu0
    %v2000 = vadd.f32 %v1848, %v1999
    %v2001 = vpop.f32.mrb[0].mxu0
    %2002 = vmatprep.mubr.bf16.mxu0 0
    %2003 = vmatmul.mubr.bf16.gmra.mrb[0].mxu0 %v1820
    %v2004 = vpop.f32.mrb[0].mxu0
    %v2005 = vadd.f32 %v1848, %v2004
    %v2006 = vpop.f32.mrb[0].mxu0
    %v2007 = vpop.f32.mrb[0].mxu0
    %v2008 = vadd.f32 %v1848, %v2007
    %v2009 = vpop.f32.mrb[0].mxu0
    %2010 = vmatprep.mubr.bf16.mxu0 0
    %2011 = vmatmul.mubr.bf16.gmra.mrb[0].mxu0 %v1821
    %v2012 = vpop.f32.mrb[0].mxu0
    %v2013 = vadd.f32 %v1848, %v2012
    %v2014 = vpop.f32.mrb[0].mxu0
    %v2015 = vpop.f32.mrb[0].mxu0
    %v2016 = vadd.f32 %v1848, %v2015
    %v2017 = vpop.f32.mrb[0].mxu0
    %2018 = vmatprep.mubr.bf16.mxu0 0
    %2019 = vmatmul.mubr.bf16.gmra.mrb[0].mxu0 %v1822
    %v2020 = vpop.f32.mrb[0].mxu0
    %v2021 = vadd.f32 %v1848, %v2020
    %v2022 = vpop.f32.mrb[0].mxu0
    %v2023 = vpop.f32.mrb[0].mxu0
    %v2024 = vadd.f32 %v1848, %v2023
    %v2025 = vpop.f32.mrb[0].mxu0
    %2026 = vmatprep.mubr.bf16.mxu0 0
    %2027 = vmatmul.mubr.bf16.gmra.mrb[0].mxu0 %v1823
    %v2028 = vpop.f32.mrb[0].mxu0
    %v2029 = vadd.f32 %v1848, %v2028
    %v2030 = vpop.f32.mrb[0].mxu0
    %v2031 = vpop.f32.mrb[0].mxu0
    %v2032 = vadd.f32 %v1848, %v2031
    %v2033 = vpop.f32.mrb[0].mxu0
    %2034 = vmatprep.mubr.bf16.mxu0 0
    %2035 = vmatmul.mubr.bf16.gmra.mrb[0].mxu0 %v1824
    %v2036 = vpop.f32.mrb[0].mxu0
    %v2037 = vadd.f32 %v1848, %v2036
    %v2038 = vpop.f32.mrb[0].mxu0
    %v2039 = vpop.f32.mrb[0].mxu0
    %v2040 = vadd.f32 %v1848, %v2039
    %v2041 = vpop.f32.mrb[0].mxu0
    %2042 = vmatprep.mubr.bf16.mxu0 0
    %2043 = vmatmul.mubr.bf16.gmra.mrb[0].mxu0 %v1825
    %v2044 = vpop.f32.mrb[0].mxu0
    %v2045 = vadd.f32 %v1848, %v2044
    %v2046 = vpop.f32.mrb[0].mxu0
    %v2047 = vpop.f32.mrb[0].mxu0
    %v2048 = vadd.f32 %v1848, %v2047
    %v2049 = vpop.f32.mrb[0].mxu0
    %2050 = vmatprep.mubr.bf16.mxu0 0
    %2051 = vmatmul.mubr.bf16.gmra.mrb[0].mxu0 %v1826
    %v2052 = vpop.f32.mrb[0].mxu0
    %v2053 = vadd.f32 %v1848, %v2052
    %v2054 = vpop.f32.mrb[0].mxu0
    %v2055 = vpop.f32.mrb[0].mxu0
    %v2056 = vadd.f32 %v1848, %v2055
    %v2057 = vpop.f32.mrb[0].mxu0
    %2058 = vdwg.mxu0
    %2059 = vst [vmem:[%s9] sm:$0xff] %v1933
    %2060 = vst [vmem:[%s9 + $0x8] sm:$0xff] %v1936
    %2061 = vst [vmem:[%s9 + $0x10] sm:$0xff] %v1941
    %2062 = vst [vmem:[%s9 + $0x18] sm:$0xff] %v1944
    %2063 = vst [vmem:[%s9 + $0x20] sm:$0xff] %v1949
    %2064 = vst [vmem:[%s9 + $0x28] sm:$0xff] %v1952
    %2065 = vst [vmem:[%s9 + $0x30] sm:$0xff] %v1957
    %2066 = vst [vmem:[%s9 + $0x38] sm:$0xff] %v1960
    %2067 = vst [vmem:[%s9 + $0x40] sm:$0xff] %v1965
    %2068 = vst [vmem:[%s9 + $0x48] sm:$0xff] %v1968
    %2069 = vst [vmem:[%s9 + $0x50] sm:$0xff] %v1973
    %2070 = vst [vmem:[%s9 + $0x58] sm:$0xff] %v1976
    %2071 = vst [vmem:[%s9 + $0x60] sm:$0xff] %v1981
    %2072 = vst [vmem:[%s9 + $0x68] sm:$0xff] %v1984
    %2073 = vst [vmem:[%s9 + $0x70] sm:$0xff] %v1989
    %2074 = vst [vmem:[%s9 + $0x78] sm:$0xff] %v1992
    %2075 = vst [vmem:[%s9 + $0x80] sm:$0xff] %v1997
    %2076 = vst [vmem:[%s9 + $0x88] sm:$0xff] %v2000
    %2077 = vst [vmem:[%s9 + $0x90] sm:$0xff] %v2005
    %2078 = vst [vmem:[%s9 + $0x98] sm:$0xff] %v2008
    %2079 = vst [vmem:[%s9 + $0xa0] sm:$0xff] %v2013
    %2080 = vst [vmem:[%s9 + $0xa8] sm:$0xff] %v2016
    %2081 = vst [vmem:[%s9 + $0xb0] sm:$0xff] %v2021
    %2082 = vst [vmem:[%s9 + $0xb8] sm:$0xff] %v2024
    %2083 = vst [vmem:[%s9 + $0xc0] sm:$0xff] %v2029
    %2084 = vst [vmem:[%s9 + $0xc8] sm:$0xff] %v2032
    %2085 = vst [vmem:[%s9 + $0xd0] sm:$0xff] %v2037
    %2086 = vst [vmem:[%s9 + $0xd8] sm:$0xff] %v2040
    %2087 = vst [vmem:[%s9 + $0xe0] sm:$0xff] %v2045
    %2088 = vst [vmem:[%s9 + $0xe8] sm:$0xff] %v2048
    %2089 = vst [vmem:[%s9 + $0xf0] sm:$0xff] %v2053
    %2090 = vst [vmem:[%s9 + $0xf8] sm:$0xff] %v2056
    // Predicated region
    $region50: #{mlp_forward.1} parent=1 // pred_check
      _
    $region51: #{mlp_forward.1} parent=1 // pred_check_branch
      %2092 = sbr.rel (0) target = $region53
    $region52: #{mlp_forward.1} parent=1 // pred_region
      _
    $region53: #{mlp_forward.1} parent=1 // pred_fallthru
      _
    // Predicated region
    $region54: #{mlp_forward.1} parent=1 // pred_check
      _
    $region55: #{mlp_forward.1} parent=1 // pred_check_branch
      %2094 = sbr.rel (0) target = $region57
    $region56: #{mlp_forward.1} parent=1 // pred_region
      _
    $region57: #{mlp_forward.1} parent=1 // pred_fallthru
      _
    %2095 = vsyncpa [#allocation3], 1
    %2096 = vsyncpa [#allocation5], 1

</llo_original>
